<compile_context>
chip_gen: v7x
topology: tpu7x:2x2x1
jax: 0.10.0
libtpu: 0.0.40
codegen_flags: <defaults>
</compile_context>

<pallas_src>
import math

import jax
import jax.numpy as jnp
from jax.experimental import pallas as pl
from jax.experimental.pallas import tpu as pltpu


# ----------------------------------------------------------------------------
# Pallas kernel: fused concat + 3x3 conv + bias for one (batch, row-tile) step
# ----------------------------------------------------------------------------

def _fam_merge_kernel(x_ref, w_ref, b_ref, o_ref, col_ref):
    """x_ref:   (TH+2, W+2, 2C)  bf16 zero-padded NHWC tile (1-row/col halo)
       w_ref:   (9*2C, Cout)     bf16 im2col-ordered weight (constant over grid)
       b_ref:   (1, Cout)        f32  bias
       o_ref:   (TH*W, Cout)     f32  output pixels of this tile
       col_ref: (TH*W, 9*2C)     bf16 VMEM scratch: fused im2col LHS
    """
    THp, Wp, C2 = x_ref.shape
    W = Wp - 2
    TH = THp - 2

    # Fused im2col, built once.  dj (W-shift) hoisted: 3 shifted views total,
    # each reused for the 3 contiguous di (H-shift) slabs.
    for dj in range(3):
        x_dj = x_ref[:, dj:dj + W, :]                       # (TH+2, W, 2C)
        for di in range(3):
            tap = di * 3 + dj
            col_ref[:, tap * C2:(tap + 1) * C2] = (
                x_dj[di:di + TH].reshape(TH * W, C2))

    # Single MXU matmul, K = 9*2C; f32 accumulator written once; bias fused.
    acc = jnp.dot(col_ref[...], w_ref[...], preferred_element_type=jnp.float32)
    o_ref[...] = (acc + b_ref[...]).astype(o_ref.dtype)


# ----------------------------------------------------------------------------
# Tiling policy
# ----------------------------------------------------------------------------

def _pick_tile_h(N, H, W, C2, Cout, budget_bytes=10 * 1024 * 1024):
    """Largest row-tile height TH dividing H whose resident blocks fit budget."""
    def need(th):
        return (2 * (th + 2) * (W + 2) * C2 * 2      # input block x double buffer (bf16)
                + 2 * th * W * Cout * 4              # output block x double buffer (f32)
                + th * W * 9 * C2 * 2                # im2col scratch (bf16)
                + th * W * Cout * 4                  # matmul result value (f32)
                + 2 * 9 * C2 * Cout * 2 + 4 * Cout)  # weight (+double buf) + bias

    th = next((t for t in range(min(H, 256), 0, -1)
               if H % t == 0 and need(t) <= budget_bytes), 1)
    # v7x has 2 TensorCores: ensure >=2 parallel grid steps even for N == 1.
    if N * (H // th) < 2 and H >= 2 and H % 2 == 0:
        th = H // 2
    return th


# ----------------------------------------------------------------------------
# Wrapper
# ----------------------------------------------------------------------------

def fam_forward(params, x1, x2, *, compute_dtype=jnp.bfloat16):
    """FAM.forward: merge(cat([x1, x2], dim=1)).  x1, x2: (N, C, H, W) NCHW."""
    N, C, H, W = x1.shape
    w, b = params["w"], params["b"]                  # (9*2C, Cout), (Cout,)
    C2 = 2 * C
    K9 = 9 * C2
    Cout = b.shape[0]

    TH = _pick_tile_h(N, H, W, C2, Cout)
    nH = H // TH
    THp, Wp = TH + 2, W + 2

    # Fused channel-concat + NCHW->NHWC + zero-pad + bf16 cast + halo row-tile
    # gather, written as one jnp expression so XLA emits one fusion (a single
    # HBM write of the kernel input; no separate concat / pad passes).
    x = jnp.concatenate([x1, x2], axis=1)                          # (N, 2C, H, W)
    x = jnp.transpose(x, (0, 2, 3, 1))                             # NHWC
    x = jnp.pad(x, ((0, 0), (1, 1), (1, 1), (0, 0))).astype(compute_dtype)
    rows = (jnp.arange(nH, dtype=jnp.int32)[:, None] * TH
            + jnp.arange(THp, dtype=jnp.int32)[None, :])           # (nH, TH+2)
    x_tiles = x[:, rows].reshape(N * nH, THp, Wp, C2)              # overlapping halos

    out = pl.pallas_call(
        _fam_merge_kernel,
        out_shape=jax.ShapeDtypeStruct((N * nH, TH * W, Cout), jnp.float32),
        grid=(N * nH,),
        in_specs=[
            pl.BlockSpec((None, THp, Wp, C2), lambda i: (i, 0, 0, 0)),
            pl.BlockSpec((K9, Cout), lambda i: (0, 0)),    # constant across grid
            pl.BlockSpec((1, Cout), lambda i: (0, 0)),
        ],
        out_specs=pl.BlockSpec((None, TH * W, Cout), lambda i: (i, 0, 0)),
        scratch_shapes=[pltpu.VMEM((TH * W, K9), compute_dtype)],
        compiler_params=pltpu.CompilerParams(
            dimension_semantics=("parallel",),       # batch x row-tiles -> both TCs
            vmem_limit_bytes=32 * 1024 * 1024),
    )(x_tiles, w.astype(compute_dtype), b.reshape(1, Cout).astype(jnp.float32))

    out = out.reshape(N, H, W, Cout)                 # pure reshape (row-major match)
    return jnp.transpose(out, (0, 3, 1, 2))          # back to NCHW (module contract)


# ----------------------------------------------------------------------------
# Parameter init (PyTorch Conv2d default init; im2col weight layout at init)
# ----------------------------------------------------------------------------

def init_fam(key, channel):
    kw, kb = jax.random.split(key)
    cin, cout, k = 2 * channel, channel, 3
    bound = 1.0 / math.sqrt(cin * k * k)
    w_oihw = jax.random.uniform(kw, (cout, cin, k, k), jnp.float32, -bound, bound)
    b = jax.random.uniform(kb, (cout,), jnp.float32, -bound, bound)
    # OIHW -> HWIO -> (9*cin, cout): row order (di, dj, c) matches the in-kernel
    # im2col column order, so the kernel never slices the weight.
    w_im2col = jnp.transpose(w_oihw, (2, 3, 1, 0)).reshape(9 * cin, cout)
    return {"w": w_im2col, "b": b}, w_oihw


# ----------------------------------------------------------------------------
# Pure-JAX reference (correctness check)
# ----------------------------------------------------------------------------

def fam_reference(w_oihw, b, x1, x2):
    x = jnp.concatenate([x1, x2], axis=1)
    y = jax.lax.conv_general_dilated(
        x, w_oihw, window_strides=(1, 1), padding=((1, 1), (1, 1)),
        dimension_numbers=("NCHW", "OIHW", "NCHW"))
    return y + b[None, :, None, None]


# ----------------------------------------------------------------------------
# Main
# ----------------------------------------------------------------------------

if __name__ == "__main__":
    key = jax.random.PRNGKey(0)
    kp, k1, k2 = jax.random.split(key, 3)

    channel = 4                                            # FAM(channel=4)
    params, w_oihw = init_fam(kp, channel)
    x1 = jax.random.normal(k1, (2, channel, 16, 16), jnp.float32)
    x2 = jax.random.normal(k2, (2, channel, 16, 16), jnp.float32)

    fam = jax.jit(lambda a, b: fam_forward(params, a, b))
    out = fam(x1, x2)
    jax.block_until_ready(out)

    ref = fam_reference(w_oihw, params["b"], x1, x2)
    err = float(jnp.max(jnp.abs(out - ref)))
    assert out.shape == (2, channel, 16, 16) and out.dtype == jnp.float32
    assert err < 5e-2, f"max abs err vs reference: {err}"

    print("KERNEL_OK")
</pallas_src>

<mosaic_0001>
module attributes {stable_mosaic.version = 11 : i64} {
  func.func @_fam_merge_kernel(%arg0: i32, %arg1: memref<1x18x18x8xbf16, #tpu.memory_space<vmem>>, %arg2: memref<72x4xbf16, #tpu.memory_space<vmem>>, %arg3: memref<1x4xf32, #tpu.memory_space<vmem>>, %arg4: memref<1x256x4xf32, #tpu.memory_space<vmem>>, %arg5: memref<256x72xbf16, #tpu.memory_space<vmem>>) attributes {dimension_semantics = [#tpu.dimension_semantics<parallel>], iteration_bounds = array<i64: 2>, scalar_prefetch = 0 : i64, scratch_operands = 1 : i64, tpu.core_type = #tpu.core_type<tc>, window_params = [{transform_indices = @transform_0, window_bounds = array<i64: 1, 18, 18, 8>}, {pipeline_mode = #tpu.pipeline_mode<synchronous>, transform_indices = @transform_1, window_bounds = array<i64: 72, 4>}, {pipeline_mode = #tpu.pipeline_mode<synchronous>, transform_indices = @transform_2, window_bounds = array<i64: 1, 4>}, {transform_indices = @transform_3, window_bounds = array<i64: 1, 256, 4>}]} {
    %c0 = arith.constant 0 : index
    %c0_0 = arith.constant 0 : index
    %c0_1 = arith.constant 0 : index
    %c0_2 = arith.constant 0 : index
    %0 = vector.load %arg1[%c0, %c0_0, %c0_1, %c0_2] : memref<1x18x18x8xbf16, #tpu.memory_space<vmem>>, vector<1x18x16x8xbf16>
    %1 = vector.shape_cast %0 : vector<1x18x16x8xbf16> to vector<18x16x8xbf16>
    %2 = vector.extract_strided_slice %1 {offsets = [0, 0, 0], sizes = [16, 16, 8], strides = [1, 1, 1]} : vector<18x16x8xbf16> to vector<16x16x8xbf16>
    %3 = vector.shape_cast %2 : vector<16x16x8xbf16> to vector<256x8xbf16>
    %c0_3 = arith.constant 0 : index
    %c0_4 = arith.constant 0 : index
    %4 = vector.load %arg5[%c0_3, %c0_4] : memref<256x72xbf16, #tpu.memory_space<vmem>>, vector<256x8xbf16>
    tpu.vector_store %arg5[%c0_3, %c0_4], %3 {strides = array<i32>} : memref<256x72xbf16, #tpu.memory_space<vmem>>, vector<256x8xbf16>,
    %5 = vector.extract_strided_slice %1 {offsets = [1, 0, 0], sizes = [16, 16, 8], strides = [1, 1, 1]} : vector<18x16x8xbf16> to vector<16x16x8xbf16>
    %6 = vector.shape_cast %5 : vector<16x16x8xbf16> to vector<256x8xbf16>
    %c0_5 = arith.constant 0 : index
    %c24 = arith.constant 24 : index
    %7 = vector.load %arg5[%c0_5, %c24] : memref<256x72xbf16, #tpu.memory_space<vmem>>, vector<256x8xbf16>
    tpu.vector_store %arg5[%c0_5, %c24], %6 {strides = array<i32>} : memref<256x72xbf16, #tpu.memory_space<vmem>>, vector<256x8xbf16>,
    %8 = vector.extract_strided_slice %1 {offsets = [2, 0, 0], sizes = [16, 16, 8], strides = [1, 1, 1]} : vector<18x16x8xbf16> to vector<16x16x8xbf16>
    %9 = vector.shape_cast %8 : vector<16x16x8xbf16> to vector<256x8xbf16>
    %c0_6 = arith.constant 0 : index
    %c48 = arith.constant 48 : index
    %10 = vector.load %arg5[%c0_6, %c48] : memref<256x72xbf16, #tpu.memory_space<vmem>>, vector<256x8xbf16>
    tpu.vector_store %arg5[%c0_6, %c48], %9 {strides = array<i32>} : memref<256x72xbf16, #tpu.memory_space<vmem>>, vector<256x8xbf16>,
    %c0_7 = arith.constant 0 : index
    %c0_8 = arith.constant 0 : index
    %c1 = arith.constant 1 : index
    %c0_9 = arith.constant 0 : index
    %11 = vector.load %arg1[%c0_7, %c0_8, %c1, %c0_9] : memref<1x18x18x8xbf16, #tpu.memory_space<vmem>>, vector<1x18x16x8xbf16>
    %12 = vector.shape_cast %11 : vector<1x18x16x8xbf16> to vector<18x16x8xbf16>
    %13 = vector.extract_strided_slice %12 {offsets = [0, 0, 0], sizes = [16, 16, 8], strides = [1, 1, 1]} : vector<18x16x8xbf16> to vector<16x16x8xbf16>
    %14 = vector.shape_cast %13 : vector<16x16x8xbf16> to vector<256x8xbf16>
    %c0_10 = arith.constant 0 : index
    %c8 = arith.constant 8 : index
    %15 = vector.load %arg5[%c0_10, %c8] : memref<256x72xbf16, #tpu.memory_space<vmem>>, vector<256x8xbf16>
    tpu.vector_store %arg5[%c0_10, %c8], %14 {strides = array<i32>} : memref<256x72xbf16, #tpu.memory_space<vmem>>, vector<256x8xbf16>,
    %16 = vector.extract_strided_slice %12 {offsets = [1, 0, 0], sizes = [16, 16, 8], strides = [1, 1, 1]} : vector<18x16x8xbf16> to vector<16x16x8xbf16>
    %17 = vector.shape_cast %16 : vector<16x16x8xbf16> to vector<256x8xbf16>
    %c0_11 = arith.constant 0 : index
    %c32 = arith.constant 32 : index
    %18 = vector.load %arg5[%c0_11, %c32] : memref<256x72xbf16, #tpu.memory_space<vmem>>, vector<256x8xbf16>
    tpu.vector_store %arg5[%c0_11, %c32], %17 {strides = array<i32>} : memref<256x72xbf16, #tpu.memory_space<vmem>>, vector<256x8xbf16>,
    %19 = vector.extract_strided_slice %12 {offsets = [2, 0, 0], sizes = [16, 16, 8], strides = [1, 1, 1]} : vector<18x16x8xbf16> to vector<16x16x8xbf16>
    %20 = vector.shape_cast %19 : vector<16x16x8xbf16> to vector<256x8xbf16>
    %c0_12 = arith.constant 0 : index
    %c56 = arith.constant 56 : index
    %21 = vector.load %arg5[%c0_12, %c56] : memref<256x72xbf16, #tpu.memory_space<vmem>>, vector<256x8xbf16>
    tpu.vector_store %arg5[%c0_12, %c56], %20 {strides = array<i32>} : memref<256x72xbf16, #tpu.memory_space<vmem>>, vector<256x8xbf16>,
    %c0_13 = arith.constant 0 : index
    %c0_14 = arith.constant 0 : index
    %c2 = arith.constant 2 : index
    %c0_15 = arith.constant 0 : index
    %22 = vector.load %arg1[%c0_13, %c0_14, %c2, %c0_15] : memref<1x18x18x8xbf16, #tpu.memory_space<vmem>>, vector<1x18x16x8xbf16>
    %23 = vector.shape_cast %22 : vector<1x18x16x8xbf16> to vector<18x16x8xbf16>
    %24 = vector.extract_strided_slice %23 {offsets = [0, 0, 0], sizes = [16, 16, 8], strides = [1, 1, 1]} : vector<18x16x8xbf16> to vector<16x16x8xbf16>
    %25 = vector.shape_cast %24 : vector<16x16x8xbf16> to vector<256x8xbf16>
    %c0_16 = arith.constant 0 : index
    %c16 = arith.constant 16 : index
    %26 = vector.load %arg5[%c0_16, %c16] : memref<256x72xbf16, #tpu.memory_space<vmem>>, vector<256x8xbf16>
    tpu.vector_store %arg5[%c0_16, %c16], %25 {strides = array<i32>} : memref<256x72xbf16, #tpu.memory_space<vmem>>, vector<256x8xbf16>,
    %27 = vector.extract_strided_slice %23 {offsets = [1, 0, 0], sizes = [16, 16, 8], strides = [1, 1, 1]} : vector<18x16x8xbf16> to vector<16x16x8xbf16>
    %28 = vector.shape_cast %27 : vector<16x16x8xbf16> to vector<256x8xbf16>
    %c0_17 = arith.constant 0 : index
    %c40 = arith.constant 40 : index
    %29 = vector.load %arg5[%c0_17, %c40] : memref<256x72xbf16, #tpu.memory_space<vmem>>, vector<256x8xbf16>
    tpu.vector_store %arg5[%c0_17, %c40], %28 {strides = array<i32>} : memref<256x72xbf16, #tpu.memory_space<vmem>>, vector<256x8xbf16>,
    %30 = vector.extract_strided_slice %23 {offsets = [2, 0, 0], sizes = [16, 16, 8], strides = [1, 1, 1]} : vector<18x16x8xbf16> to vector<16x16x8xbf16>
    %31 = vector.shape_cast %30 : vector<16x16x8xbf16> to vector<256x8xbf16>
    %c0_18 = arith.constant 0 : index
    %c64 = arith.constant 64 : index
    %32 = vector.load %arg5[%c0_18, %c64] : memref<256x72xbf16, #tpu.memory_space<vmem>>, vector<256x8xbf16>
    tpu.vector_store %arg5[%c0_18, %c64], %31 {strides = array<i32>} : memref<256x72xbf16, #tpu.memory_space<vmem>>, vector<256x8xbf16>,
    %c0_19 = arith.constant 0 : index
    %c0_20 = arith.constant 0 : index
    %33 = vector.load %arg5[%c0_19, %c0_20] : memref<256x72xbf16, #tpu.memory_space<vmem>>, vector<256x72xbf16>
    %c0_21 = arith.constant 0 : index
    %c0_22 = arith.constant 0 : index
    %34 = vector.load %arg2[%c0_21, %c0_22] : memref<72x4xbf16, #tpu.memory_space<vmem>>, vector<72x4xbf16>
    %cst = arith.constant dense<0.000000e+00> : vector<256x4xf32>
    %35 = tpu.matmul %33, %34, %cst {dimension_numbers = #tpu.dot_dimension_numbers<[1], [0], [0], [1], [0, 0, 1, 1], [], []>} : vector<256x72xbf16>, vector<72x4xbf16>, vector<256x4xf32> -> vector<256x4xf32>
    %c0_23 = arith.constant 0 : index
    %c0_24 = arith.constant 0 : index
    %36 = vector.load %arg3[%c0_23, %c0_24] : memref<1x4xf32, #tpu.memory_space<vmem>>, vector<1x4xf32>
    %37 = vector.broadcast %36 : vector<1x4xf32> to vector<256x4xf32>
    %38 = arith.addf %35, %37 : vector<256x4xf32>
    %c0_25 = arith.constant 0 : index
    %c0_26 = arith.constant 0 : index
    %c0_27 = arith.constant 0 : index
    %39 = vector.load %arg4[%c0_25, %c0_26, %c0_27] : memref<1x256x4xf32, #tpu.memory_space<vmem>>, vector<1x256x4xf32>
    %40 = vector.shape_cast %39 : vector<1x256x4xf32> to vector<256x4xf32>
    %41 = vector.shape_cast %38 : vector<256x4xf32> to vector<1x256x4xf32>
    tpu.vector_store %arg4[%c0_25, %c0_26, %c0_27], %41 {strides = array<i32>} : memref<1x256x4xf32, #tpu.memory_space<vmem>>, vector<1x256x4xf32>,
    return
  }
  func.func @transform_0(%arg0: i32) -> (i32, i32, i32, i32) {
    %c0_i32 = arith.constant 0 : i32
    %c0_i32_0 = arith.constant 0 : i32
    %c0_i32_1 = arith.constant 0 : i32
    %c0_i32_2 = arith.constant 0 : i32
    return %arg0, %c0_i32, %c0_i32_0, %c0_i32_1 : i32, i32, i32, i32
  }
  func.func @transform_1(%arg0: i32) -> (i32, i32) {
    %c0_i32 = arith.constant 0 : i32
    %c0_i32_0 = arith.constant 0 : i32
    %c0_i32_1 = arith.constant 0 : i32
    return %c0_i32, %c0_i32_0 : i32, i32
  }
  func.func @transform_2(%arg0: i32) -> (i32, i32) {
    %c0_i32 = arith.constant 0 : i32
    %c0_i32_0 = arith.constant 0 : i32
    %c0_i32_1 = arith.constant 0 : i32
    return %c0_i32, %c0_i32_0 : i32, i32
  }
  func.func @transform_3(%arg0: i32) -> (i32, i32, i32) {
    %c0_i32 = arith.constant 0 : i32
    %c0_i32_0 = arith.constant 0 : i32
    %c0_i32_1 = arith.constant 0 : i32
    return %arg0, %c0_i32, %c0_i32_0 : i32, i32, i32
  }
}

</mosaic_0001>

<llo_original>
// kernel: _lambda_.1
$region0: #{_lambda_.1}
  #allocation0 [shape = 'u32[]', space=smem, size = 0x4, offset = 0x4, fixed_abs, tag = 'smem constant byte address 0x4 - core index']
  #allocation1 [shape = 'u32[144,128]{1,0:T(1,128)}', space=vmem, size = 0x12000, scoped, tag = 'internal scratch']
  #allocation2 [shape = 'bf16[256,72]{1,0:T(16,128)(2,1)}', space=vmem, size = 0x10000, scoped, tag = 'scratch operand']
  %s0 = inlined_call_operand.vmem [shape: bf16[2,18,18,8], index: 0, kind: input, shape index: {}]
  %s1 = inlined_call_operand.vmem [shape: bf16[72,4], index: 1, kind: input, shape index: {}]
  %s2 = inlined_call_operand.vmem [shape: f32[1,4], index: 2, kind: input, shape index: {}]
  %s3 = inlined_call_operand.vmem [shape: f32[2,256,4], index: 3, kind: output, shape index: {}]
  %s4 = sld [smem:[#allocation0]]
  $region45: #{_lambda_.1} parent=0
    _
  %s6 = ssub.s32 1, %s4
  %s7 = scalar_select 0, %s6, %s4
  loop: start=0, step=1, limit=4
  $region2: #{_lambda_.1} parent=0 // loop_pre_header
    _
  $region3: #{_lambda_.1} parent=0 // loop_header
    %s9 = sphi 0, %s13
    %p10 = scmp.ge.s32.totalorder %s9, 4
    %s19 = sphi 0, %s21
    %s22 = sphi 0, %s19
    %s23 = sphi 0, %s22
    %s39 = sphi 0, %s23
    %s43 = sphi 0, %s43
    %s45 = sphi 0, %s43
    %s46 = sphi 0, %s45
    %s60 = sphi 0, %s46
    %s64 = sphi 0, %s64
    %s66 = sphi 0, %s64
    %s67 = sphi 0, %s66
    %s81 = sphi 0, %s67
    %s87 = sphi 0, %s89
    %s90 = sphi 0, %s87
    %s91 = sphi 0, %s90
    %s107 = sphi 0, %s91
  $region4: #{_lambda_.1} parent=0 // loop_header_branch
    %12 = sbr.rel (%p10) target = $region8
  $region5: #{_lambda_.1} parent=0 // loop_body
    %s14 = ssub.s32 %s9, 1
    %s15 = ssub.s32 %s9, 2
    %s16 = sadd.s32 %s9, 1
    %s17 = ssub.s32 %s9, %s16
    %p18 = scmp.eq.s32.totalorder %s17, 0
    %s20 = sadd.s32 %s19, 1
    %s21 = scalar_select %p18, %s19, %s20
    %p24 = pneg %p18
    %p25 = scmp.eq.s32.totalorder %s9, 1
    %p26 = por %p24, %p25
    %p27 = scmp.ne.s32.totalorder %s19, %s22
    %p28 = scmp.eq.s32.totalorder %s9, 0
    %p29 = por %p27, %p28
    %p30 = scmp.ne.s32.totalorder %s19, %s22
    %p31 = scmp.eq.s32.totalorder %s14, 1
    %p32 = por %p30, %p31
    %p33 = scmp.ne.s32.totalorder %s22, %s23
    %p34 = scmp.eq.s32.totalorder %s14, 0
    %p35 = por %p33, %p34
    %p36 = scmp.ne.s32.totalorder %s22, %s23
    %p37 = scmp.eq.s32.totalorder %s15, 1
    %p38 = por %p36, %p37
    %p40 = scmp.ne.s32.totalorder %s23, %s39
    %p41 = scmp.eq.s32.totalorder %s15, 0
    %p42 = por %p40, %p41
    %s44 = sadd.s32 %s43, 1
    %p47 = scmp.eq.s32.totalorder %s9, 1
    %p48 = scmp.ne.s32.totalorder %s43, %s45
    %p49 = scmp.eq.s32.totalorder %s9, 0
    %p50 = por %p48, %p49
    %p51 = scmp.ne.s32.totalorder %s43, %s45
    %p52 = scmp.eq.s32.totalorder %s14, 1
    %p53 = por %p51, %p52
    %p54 = scmp.ne.s32.totalorder %s45, %s46
    %p55 = scmp.eq.s32.totalorder %s14, 0
    %p56 = por %p54, %p55
    %p57 = scmp.ne.s32.totalorder %s45, %s46
    %p58 = scmp.eq.s32.totalorder %s15, 1
    %p59 = por %p57, %p58
    %p61 = scmp.ne.s32.totalorder %s46, %s60
    %p62 = scmp.eq.s32.totalorder %s15, 0
    %p63 = por %p61, %p62
    %s65 = sadd.s32 %s64, 1
    %p68 = scmp.eq.s32.totalorder %s9, 1
    %p69 = scmp.ne.s32.totalorder %s64, %s66
    %p70 = scmp.eq.s32.totalorder %s9, 0
    %p71 = por %p69, %p70
    %p72 = scmp.ne.s32.totalorder %s64, %s66
    %p73 = scmp.eq.s32.totalorder %s14, 1
    %p74 = por %p72, %p73
    %p75 = scmp.ne.s32.totalorder %s66, %s67
    %p76 = scmp.eq.s32.totalorder %s14, 0
    %p77 = por %p75, %p76
    %p78 = scmp.ne.s32.totalorder %s66, %s67
    %p79 = scmp.eq.s32.totalorder %s15, 1
    %p80 = por %p78, %p79
    %p82 = scmp.ne.s32.totalorder %s67, %s81
    %p83 = scmp.eq.s32.totalorder %s15, 0
    %p84 = por %p82, %p83
    %s85 = ssub.s32 %s9, %s16
    %p86 = scmp.eq.s32.totalorder %s85, 0
    %s88 = sadd.s32 %s87, 1
    %s89 = scalar_select %p86, %s87, %s88
    %p92 = pneg %p86
    %p93 = scmp.eq.s32.totalorder %s9, 1
    %p94 = por %p92, %p93
    %p95 = scmp.ne.s32.totalorder %s87, %s90
    %p96 = scmp.eq.s32.totalorder %s9, 0
    %p97 = por %p95, %p96
    %p98 = scmp.ne.s32.totalorder %s87, %s90
    %p99 = scmp.eq.s32.totalorder %s14, 1
    %p100 = por %p98, %p99
    %p101 = scmp.ne.s32.totalorder %s90, %s91
    %p102 = scmp.eq.s32.totalorder %s14, 0
    %p103 = por %p101, %p102
    %p104 = scmp.ne.s32.totalorder %s90, %s91
    %p105 = scmp.eq.s32.totalorder %s15, 1
    %p106 = por %p104, %p105
    %p108 = scmp.ne.s32.totalorder %s91, %s107
    %p109 = scmp.eq.s32.totalorder %s15, 0
    %p110 = por %p108, %p109
    %p111 = scmp.le.s32.totalorder 1, %s9
    %p112 = scmp.lt.s32.totalorder %s9, 3
    %p113 = pnand %p111, %p112
    %p114 = pneg %p113
    // Predicated region
    $region9: #{_lambda_.1} parent=5 // pred_check
      _
    $region10: #{_lambda_.1} parent=5 // pred_check_branch
      %116 = sbr.rel (%p113) target = $region12
    $region11: #{_lambda_.1} parent=5 // pred_region
      %s117 = ssub.s32 %s9, 1
      // Predicated region
      $region13: #{_lambda_.1} parent=11 // pred_check
        %p118 = pneg %p56
      $region14: #{_lambda_.1} parent=11 // pred_check_branch
        %120 = sbr.rel (%p118) target = $region16
      $region15: #{_lambda_.1} parent=11 // pred_region
        _
      $region16: #{_lambda_.1} parent=11 // pred_fallthru
        _
      // Predicated region
      $region17: #{_lambda_.1} parent=11 // pred_check
        %p121 = pneg %p77
      $region18: #{_lambda_.1} parent=11 // pred_check_branch
        %123 = sbr.rel (%p121) target = $region20
      $region19: #{_lambda_.1} parent=11 // pred_region
        _
      $region20: #{_lambda_.1} parent=11 // pred_fallthru
        _
    $region12: #{_lambda_.1} parent=5 // pred_fallthru
      _
    %p124 = scmp.lt.s32.totalorder %s9, 2
    // Predicated region
    $region21: #{_lambda_.1} parent=5 // pred_check
      %p125 = pneg %p124
    $region22: #{_lambda_.1} parent=5 // pred_check_branch
      %127 = sbr.rel (%p125) target = $region24
    $region23: #{_lambda_.1} parent=5 // pred_region
      // Predicated region
      $region25: #{_lambda_.1} parent=23 // pred_check
        %p128 = pneg %p29
      $region26: #{_lambda_.1} parent=23 // pred_check_branch
        %130 = sbr.rel (%p128) target = $region28
      $region27: #{_lambda_.1} parent=23 // pred_region
        %p131 = scmp.lt.s32.totalorder %s9, 1
        %s132 = scalar_select %p131, %s9, 1
        %s133 = smul.addr %s132, 54
        %s134 = smul.addr %s133, 4
        %s135 = scalar_lea.vmem %s0, %s134
      $region28: #{_lambda_.1} parent=23 // pred_fallthru
        _
    $region24: #{_lambda_.1} parent=5 // pred_fallthru
      _
    %p136 = scmp.le.s32.totalorder 1, %s9
    %p137 = scmp.lt.s32.totalorder %s9, 3
    %p138 = pnand %p136, %p137
    %p139 = pneg %p138
    // Predicated region
    $region29: #{_lambda_.1} parent=5 // pred_check
      _
    $region30: #{_lambda_.1} parent=5 // pred_check_branch
      %141 = sbr.rel (%p138) target = $region32
    $region31: #{_lambda_.1} parent=5 // pred_region
      %s142 = ssub.s32 %s9, 1
      %p143 = scmp.lt.s32.totalorder %s14, 1
      %s144 = scalar_select %p143, %s14, 1
      %s145 = smul.addr %s144, 54
      %s146 = smul.addr %s145, 4
      %s147 = scalar_lea.vmem %s0, %s146
      %p148 = pneg %p35
      %p149 = pneg %p32
      %p150 = pneg %p56
      %p151 = pneg %p53
      %p152 = pneg %p77
      %p153 = pneg %p74
      %p154 = pneg %p103
      %p155 = pneg %p100
      %p156 = scmp.lt.s32.totalorder %s14, 1
      %s157 = scalar_select %p156, %s14, 1
      %s158 = smul.addr %s157, 32
      %s159 = smul.addr %s158, 8
      %s160 = scalar_lea.vmem %s3, %s159
      %p161 = scmp.lt.s32.totalorder %s14, 1
      %s162 = scalar_select %p161, %s14, 1
      %s163 = smul.addr %s162, 54
      %s164 = smul.addr %s163, 4
      %s165 = scalar_lea.vmem %s0, %s164
      %p166 = scmp.lt.s32.totalorder %s14, 1
      %s167 = scalar_select %p166, %s14, 1
      %s168 = smul.addr %s167, 32
      %s169 = smul.addr %s168, 8
      %s170 = scalar_lea.vmem %s3, %s169
      %v172 = vld [vmem:[%s165] sm:$0xf]
      %v173 = vld [vmem:[%s165 + $0x4] sm:$0xf]
      %v174 = vld [vmem:[%s165 + $0xc] sm:$0xf]
      %v175 = vld [vmem:[%s165 + $0x10] sm:$0xf]
      %v176 = vld [vmem:[%s165 + $0x18] sm:$0xf]
      %v177 = vld [vmem:[%s165 + $0x1c] sm:$0xf]
      %v178 = vld [vmem:[%s165 + $0x24] sm:$0xf]
      %v179 = vld [vmem:[%s165 + $0x28] sm:$0xf]
      %v180 = vld [vmem:[%s165 + $0x30] sm:$0xf]
      %v181 = vld [vmem:[%s165 + $0x34] sm:$0xf]
      %v182 = vld [vmem:[%s165 + $0x3c] sm:$0xf]
      %v183 = vld [vmem:[%s165 + $0x40] sm:$0xf]
      %v184 = vld [vmem:[%s165 + $0x48] sm:$0xf]
      %v185 = vld [vmem:[%s165 + $0x4c] sm:$0xf]
      %v186 = vld [vmem:[%s165 + $0x54] sm:$0xf]
      %v187 = vld [vmem:[%s165 + $0x58] sm:$0xf]
      %v188 = vld [vmem:[%s165 + $0x60] sm:$0xf]
      %v189 = vld [vmem:[%s165 + $0x64] sm:$0xf]
      %v190 = vld [vmem:[%s165 + $0x6c] sm:$0xf]
      %v191 = vld [vmem:[%s165 + $0x70] sm:$0xf]
      %v192 = vld [vmem:[%s165 + $0x78] sm:$0xf]
      %v193 = vld [vmem:[%s165 + $0x7c] sm:$0xf]
      %v194 = vld [vmem:[%s165 + $0x84] sm:$0xf]
      %v195 = vld [vmem:[%s165 + $0x88] sm:$0xf]
      %v196 = vld [vmem:[%s165 + $0x90] sm:$0xf]
      %v197 = vld [vmem:[%s165 + $0x94] sm:$0xf]
      %v198 = vld [vmem:[%s165 + $0x9c] sm:$0xf]
      %v199 = vld [vmem:[%s165 + $0xa0] sm:$0xf]
      %v200 = vld [vmem:[%s165 + $0xa8] sm:$0xf]
      %v201 = vld [vmem:[%s165 + $0xac] sm:$0xf]
      %v202 = vld [vmem:[%s165 + $0xb4] sm:$0xf]
      %v203 = vld [vmem:[%s165 + $0xb8] sm:$0xf]
      %v204 = vld [vmem:[%s165 + $0xc0] sm:$0xf]
      %v205 = vld [vmem:[%s165 + $0xc4] sm:$0xf]
      %v206 = vld [vmem:[%s165 + $0xcc] sm:$0xf]
      %v207 = vld [vmem:[%s165 + $0xd0] sm:$0xf]
      %v240 = vunpack.c.l.b16 %v172
      %v241 = vunpack.c.l.b16 %v173
      %v242 = vunpack.c.l.b16 %v174
      %v243 = vunpack.c.l.b16 %v175
      %v244 = vunpack.c.l.b16 %v176
      %v245 = vunpack.c.l.b16 %v177
      %v246 = vunpack.c.l.b16 %v178
      %v247 = vunpack.c.l.b16 %v179
      %v248 = vunpack.c.l.b16 %v180
      %v249 = vunpack.c.l.b16 %v181
      %v250 = vunpack.c.l.b16 %v182
      %v251 = vunpack.c.l.b16 %v183
      %v252 = vunpack.c.l.b16 %v184
      %v253 = vunpack.c.l.b16 %v185
      %v254 = vunpack.c.l.b16 %v186
      %v255 = vunpack.c.l.b16 %v187
      %v256 = vunpack.c.l.b16 %v188
      %v257 = vunpack.c.l.b16 %v189
      %v258 = vunpack.c.l.b16 %v190
      %v259 = vunpack.c.l.b16 %v191
      %v260 = vunpack.c.l.b16 %v192
      %v261 = vunpack.c.l.b16 %v193
      %v262 = vunpack.c.l.b16 %v194
      %v263 = vunpack.c.l.b16 %v195
      %v264 = vunpack.c.l.b16 %v196
      %v265 = vunpack.c.l.b16 %v197
      %v266 = vunpack.c.l.b16 %v198
      %v267 = vunpack.c.l.b16 %v199
      %v268 = vunpack.c.l.b16 %v200
      %v269 = vunpack.c.l.b16 %v201
      %v270 = vunpack.c.l.b16 %v202
      %v271 = vunpack.c.l.b16 %v203
      %v272 = vpack.c.b16 %v241, %v240
      %v273 = vpack.c.b16 %v243, %v242
      %v274 = vpack.c.b16 %v245, %v244
      %v275 = vpack.c.b16 %v247, %v246
      %v276 = vpack.c.b16 %v249, %v248
      %v277 = vpack.c.b16 %v251, %v250
      %v278 = vpack.c.b16 %v253, %v252
      %v279 = vpack.c.b16 %v255, %v254
      %v280 = vpack.c.b16 %v257, %v256
      %v281 = vpack.c.b16 %v259, %v258
      %v282 = vpack.c.b16 %v261, %v260
      %v283 = vpack.c.b16 %v263, %v262
      %v284 = vpack.c.b16 %v265, %v264
      %v285 = vpack.c.b16 %v267, %v266
      %v286 = vpack.c.b16 %v269, %v268
      %v287 = vpack.c.b16 %v271, %v270
      %vm304 = vcmask 64512
      %305 = vst.msk [vmem:[#allocation2] sm:$0xff] %vm304, %v272
      %306 = vst.msk [vmem:[#allocation2 + $0x8] sm:$0xff] %vm304, %v273
      %307 = vst.msk [vmem:[#allocation2 + $0x10] sm:$0xff] %vm304, %v274
      %308 = vst.msk [vmem:[#allocation2 + $0x18] sm:$0xff] %vm304, %v275
      %309 = vst.msk [vmem:[#allocation2 + $0x20] sm:$0xff] %vm304, %v276
      %310 = vst.msk [vmem:[#allocation2 + $0x28] sm:$0xff] %vm304, %v277
      %311 = vst.msk [vmem:[#allocation2 + $0x30] sm:$0xff] %vm304, %v278
      %312 = vst.msk [vmem:[#allocation2 + $0x38] sm:$0xff] %vm304, %v279
      %313 = vst.msk [vmem:[#allocation2 + $0x40] sm:$0xff] %vm304, %v280
      %314 = vst.msk [vmem:[#allocation2 + $0x48] sm:$0xff] %vm304, %v281
      %315 = vst.msk [vmem:[#allocation2 + $0x50] sm:$0xff] %vm304, %v282
      %316 = vst.msk [vmem:[#allocation2 + $0x58] sm:$0xff] %vm304, %v283
      %317 = vst.msk [vmem:[#allocation2 + $0x60] sm:$0xff] %vm304, %v284
      %318 = vst.msk [vmem:[#allocation2 + $0x68] sm:$0xff] %vm304, %v285
      %319 = vst.msk [vmem:[#allocation2 + $0x70] sm:$0xff] %vm304, %v286
      %320 = vst.msk [vmem:[#allocation2 + $0x78] sm:$0xff] %vm304, %v287
      %v323 = vunpack.c.l.b16 %v204
      %v324 = vunpack.c.l.b16 %v205
      %v325 = vpack.c.b16 %v324, %v323
      %326 = vrot.lane.b32.xlu0 %v273, 24
      %v327 = vpop.permute.xlu0 %326
      %328 = vrot.lane.b32.xlu0 %v274, 24
      %v329 = vpop.permute.xlu0 %328
      %330 = vrot.lane.b32.xlu0 %v275, 24
      %v331 = vpop.permute.xlu0 %330
      %332 = vrot.lane.b32.xlu0 %v276, 24
      %v333 = vpop.permute.xlu0 %332
      %334 = vrot.lane.b32.xlu0 %v277, 24
      %v335 = vpop.permute.xlu0 %334
      %336 = vrot.lane.b32.xlu0 %v278, 24
      %v337 = vpop.permute.xlu0 %336
      %338 = vrot.lane.b32.xlu0 %v279, 24
      %v339 = vpop.permute.xlu0 %338
      %340 = vrot.lane.b32.xlu0 %v280, 24
      %v341 = vpop.permute.xlu0 %340
      %342 = vrot.lane.b32.xlu0 %v281, 24
      %v343 = vpop.permute.xlu0 %342
      %344 = vrot.lane.b32.xlu0 %v282, 24
      %v345 = vpop.permute.xlu0 %344
      %346 = vrot.lane.b32.xlu0 %v283, 24
      %v347 = vpop.permute.xlu0 %346
      %348 = vrot.lane.b32.xlu0 %v284, 24
      %v349 = vpop.permute.xlu0 %348
      %350 = vrot.lane.b32.xlu0 %v285, 24
      %v351 = vpop.permute.xlu0 %350
      %352 = vrot.lane.b32.xlu0 %v286, 24
      %v353 = vpop.permute.xlu0 %352
      %354 = vrot.lane.b32.xlu0 %v287, 24
      %v355 = vpop.permute.xlu0 %354
      %356 = vrot.lane.b32.xlu0 %v325, 24
      %v357 = vpop.permute.xlu0 %356
      %vm374 = vcmask 261312
      %375 = vst.msk [vmem:[#allocation2] sm:$0xff] %vm374, %v327
      %376 = vst.msk [vmem:[#allocation2 + $0x8] sm:$0xff] %vm374, %v329
      %377 = vst.msk [vmem:[#allocation2 + $0x10] sm:$0xff] %vm374, %v331
      %378 = vst.msk [vmem:[#allocation2 + $0x18] sm:$0xff] %vm374, %v333
      %379 = vst.msk [vmem:[#allocation2 + $0x20] sm:$0xff] %vm374, %v335
      %380 = vst.msk [vmem:[#allocation2 + $0x28] sm:$0xff] %vm374, %v337
      %381 = vst.msk [vmem:[#allocation2 + $0x30] sm:$0xff] %vm374, %v339
      %382 = vst.msk [vmem:[#allocation2 + $0x38] sm:$0xff] %vm374, %v341
      %383 = vst.msk [vmem:[#allocation2 + $0x40] sm:$0xff] %vm374, %v343
      %384 = vst.msk [vmem:[#allocation2 + $0x48] sm:$0xff] %vm374, %v345
      %385 = vst.msk [vmem:[#allocation2 + $0x50] sm:$0xff] %vm374, %v347
      %386 = vst.msk [vmem:[#allocation2 + $0x58] sm:$0xff] %vm374, %v349
      %387 = vst.msk [vmem:[#allocation2 + $0x60] sm:$0xff] %vm374, %v351
      %388 = vst.msk [vmem:[#allocation2 + $0x68] sm:$0xff] %vm374, %v353
      %389 = vst.msk [vmem:[#allocation2 + $0x70] sm:$0xff] %vm374, %v355
      %390 = vst.msk [vmem:[#allocation2 + $0x78] sm:$0xff] %vm374, %v357
      %v393 = vunpack.c.l.b16 %v206
      %v394 = vunpack.c.l.b16 %v207
      %v395 = vpack.c.b16 %v394, %v393
      %396 = vrot.lane.b32.xlu0 %v274, 48
      %v397 = vpop.permute.xlu0 %396
      %398 = vrot.lane.b32.xlu0 %v275, 48
      %v399 = vpop.permute.xlu0 %398
      %400 = vrot.lane.b32.xlu0 %v276, 48
      %v401 = vpop.permute.xlu0 %400
      %402 = vrot.lane.b32.xlu0 %v277, 48
      %v403 = vpop.permute.xlu0 %402
      %404 = vrot.lane.b32.xlu0 %v278, 48
      %v405 = vpop.permute.xlu0 %404
      %406 = vrot.lane.b32.xlu0 %v279, 48
      %v407 = vpop.permute.xlu0 %406
      %408 = vrot.lane.b32.xlu0 %v280, 48
      %v409 = vpop.permute.xlu0 %408
      %410 = vrot.lane.b32.xlu0 %v281, 48
      %v411 = vpop.permute.xlu0 %410
      %412 = vrot.lane.b32.xlu0 %v282, 48
      %v413 = vpop.permute.xlu0 %412
      %414 = vrot.lane.b32.xlu0 %v283, 48
      %v415 = vpop.permute.xlu0 %414
      %416 = vrot.lane.b32.xlu0 %v284, 48
      %v417 = vpop.permute.xlu0 %416
      %418 = vrot.lane.b32.xlu0 %v285, 48
      %v419 = vpop.permute.xlu0 %418
      %420 = vrot.lane.b32.xlu0 %v286, 48
      %v421 = vpop.permute.xlu0 %420
      %422 = vrot.lane.b32.xlu0 %v287, 48
      %v423 = vpop.permute.xlu0 %422
      %424 = vrot.lane.b32.xlu0 %v325, 48
      %v425 = vpop.permute.xlu0 %424
      %426 = vrot.lane.b32.xlu0 %v395, 48
      %v427 = vpop.permute.xlu0 %426
      %vm444 = vcmask 458112
      %445 = vst.msk [vmem:[#allocation2] sm:$0xff] %vm444, %v397
      %446 = vst.msk [vmem:[#allocation2 + $0x8] sm:$0xff] %vm444, %v399
      %447 = vst.msk [vmem:[#allocation2 + $0x10] sm:$0xff] %vm444, %v401
      %448 = vst.msk [vmem:[#allocation2 + $0x18] sm:$0xff] %vm444, %v403
      %449 = vst.msk [vmem:[#allocation2 + $0x20] sm:$0xff] %vm444, %v405
      %450 = vst.msk [vmem:[#allocation2 + $0x28] sm:$0xff] %vm444, %v407
      %451 = vst.msk [vmem:[#allocation2 + $0x30] sm:$0xff] %vm444, %v409
      %452 = vst.msk [vmem:[#allocation2 + $0x38] sm:$0xff] %vm444, %v411
      %453 = vst.msk [vmem:[#allocation2 + $0x40] sm:$0xff] %vm444, %v413
      %454 = vst.msk [vmem:[#allocation2 + $0x48] sm:$0xff] %vm444, %v415
      %455 = vst.msk [vmem:[#allocation2 + $0x50] sm:$0xff] %vm444, %v417
      %456 = vst.msk [vmem:[#allocation2 + $0x58] sm:$0xff] %vm444, %v419
      %457 = vst.msk [vmem:[#allocation2 + $0x60] sm:$0xff] %vm444, %v421
      %458 = vst.msk [vmem:[#allocation2 + $0x68] sm:$0xff] %vm444, %v423
      %459 = vst.msk [vmem:[#allocation2 + $0x70] sm:$0xff] %vm444, %v425
      %460 = vst.msk [vmem:[#allocation2 + $0x78] sm:$0xff] %vm444, %v427
      %v461 = vld [vmem:[%s165] sm:$0xf]
      %v462 = vld [vmem:[%s165 + $0x4] sm:$0xf]
      %v463 = vld [vmem:[%s165 + $0x8] sm:$0x1]
      %v464 = vld [vmem:[%s165 + $0xc] sm:$0xf]
      %v465 = vld [vmem:[%s165 + $0x10] sm:$0xf]
      %v466 = vld [vmem:[%s165 + $0x14] sm:$0x1]
      %v467 = vld [vmem:[%s165 + $0x18] sm:$0xf]
      %v468 = vld [vmem:[%s165 + $0x1c] sm:$0xf]
      %v469 = vld [vmem:[%s165 + $0x20] sm:$0x1]
      %v470 = vld [vmem:[%s165 + $0x24] sm:$0xf]
      %v471 = vld [vmem:[%s165 + $0x28] sm:$0xf]
      %v472 = vld [vmem:[%s165 + $0x2c] sm:$0x1]
      %v473 = vld [vmem:[%s165 + $0x30] sm:$0xf]
      %v474 = vld [vmem:[%s165 + $0x34] sm:$0xf]
      %v475 = vld [vmem:[%s165 + $0x38] sm:$0x1]
      %v476 = vld [vmem:[%s165 + $0x3c] sm:$0xf]
      %v477 = vld [vmem:[%s165 + $0x40] sm:$0xf]
      %v478 = vld [vmem:[%s165 + $0x44] sm:$0x1]
      %v479 = vld [vmem:[%s165 + $0x48] sm:$0xf]
      %v480 = vld [vmem:[%s165 + $0x4c] sm:$0xf]
      %v481 = vld [vmem:[%s165 + $0x50] sm:$0x1]
      %v482 = vld [vmem:[%s165 + $0x54] sm:$0xf]
      %v483 = vld [vmem:[%s165 + $0x58] sm:$0xf]
      %v484 = vld [vmem:[%s165 + $0x5c] sm:$0x1]
      %v485 = vld [vmem:[%s165 + $0x60] sm:$0xf]
      %v486 = vld [vmem:[%s165 + $0x64] sm:$0xf]
      %v487 = vld [vmem:[%s165 + $0x68] sm:$0x1]
      %v488 = vld [vmem:[%s165 + $0x6c] sm:$0xf]
      %v489 = vld [vmem:[%s165 + $0x70] sm:$0xf]
      %v490 = vld [vmem:[%s165 + $0x74] sm:$0x1]
      %v491 = vld [vmem:[%s165 + $0x78] sm:$0xf]
      %v492 = vld [vmem:[%s165 + $0x7c] sm:$0xf]
      %v493 = vld [vmem:[%s165 + $0x80] sm:$0x1]
      %v494 = vld [vmem:[%s165 + $0x84] sm:$0xf]
      %v495 = vld [vmem:[%s165 + $0x88] sm:$0xf]
      %v496 = vld [vmem:[%s165 + $0x8c] sm:$0x1]
      %v497 = vld [vmem:[%s165 + $0x90] sm:$0xf]
      %v498 = vld [vmem:[%s165 + $0x94] sm:$0xf]
      %v499 = vld [vmem:[%s165 + $0x98] sm:$0x1]
      %v500 = vld [vmem:[%s165 + $0x9c] sm:$0xf]
      %v501 = vld [vmem:[%s165 + $0xa0] sm:$0xf]
      %v502 = vld [vmem:[%s165 + $0xa4] sm:$0x1]
      %v503 = vld [vmem:[%s165 + $0xa8] sm:$0xf]
      %v504 = vld [vmem:[%s165 + $0xac] sm:$0xf]
      %v505 = vld [vmem:[%s165 + $0xb0] sm:$0x1]
      %v506 = vld [vmem:[%s165 + $0xb4] sm:$0xf]
      %v507 = vld [vmem:[%s165 + $0xb8] sm:$0xf]
      %v508 = vld [vmem:[%s165 + $0xbc] sm:$0x1]
      %v509 = vld [vmem:[%s165 + $0xc0] sm:$0xf]
      %v510 = vld [vmem:[%s165 + $0xc4] sm:$0xf]
      %v511 = vld [vmem:[%s165 + $0xc8] sm:$0x1]
      %v512 = vld [vmem:[%s165 + $0xcc] sm:$0xf]
      %v513 = vld [vmem:[%s165 + $0xd0] sm:$0xf]
      %v514 = vld [vmem:[%s165 + $0xd4] sm:$0x1]
      %vm515 = vsmask.f32 3328
      %vm516 = vsmask.f32 7440
      %vm517 = vmor %vm515, %vm516
      %v519 = vshrl.u32 %v461, 16
      %v521 = vrot.slane %v519, 4
      %v522 = vshll.u32 %v461, 16
      %v524 = vrot.slane %v522, 5
      %v525 = vor.u32 %v521, %v524
      %v526 = vrot.slane %v525, 4
      %v528 = vshll.u32 %v462, 16
      %v530 = vrot.slane %v528, 5
      %v531 = vsel %vm517, %v526, %v530
      %v532 = vshrl.u32 %v462, 16
      %v534 = vrot.slane %v532, 4
      %v535 = vor.u32 %v534, %v530
      %v536 = vrot.slane %v535, 4
      %v538 = vshll.u32 %v463, 16
      %v540 = vrot.slane %v538, 5
      %v541 = vsel %vm517, %v536, %v540
      %v543 = vshrl.u32 %v464, 16
      %v545 = vrot.slane %v543, 4
      %v546 = vshll.u32 %v464, 16
      %v548 = vrot.slane %v546, 5
      %v549 = vor.u32 %v545, %v548
      %v550 = vrot.slane %v549, 4
      %v552 = vshll.u32 %v465, 16
      %v554 = vrot.slane %v552, 5
      %v555 = vsel %vm517, %v550, %v554
      %v556 = vshrl.u32 %v465, 16
      %v558 = vrot.slane %v556, 4
      %v559 = vor.u32 %v558, %v554
      %v560 = vrot.slane %v559, 4
      %v562 = vshll.u32 %v466, 16
      %v564 = vrot.slane %v562, 5
      %v565 = vsel %vm517, %v560, %v564
      %v567 = vshrl.u32 %v467, 16
      %v569 = vrot.slane %v567, 4
      %v570 = vshll.u32 %v467, 16
      %v572 = vrot.slane %v570, 5
      %v573 = vor.u32 %v569, %v572
      %v574 = vrot.slane %v573, 4
      %v576 = vshll.u32 %v468, 16
      %v578 = vrot.slane %v576, 5
      %v579 = vsel %vm517, %v574, %v578
      %v580 = vshrl.u32 %v468, 16
      %v582 = vrot.slane %v580, 4
      %v583 = vor.u32 %v582, %v578
      %v584 = vrot.slane %v583, 4
      %v586 = vshll.u32 %v469, 16
      %v588 = vrot.slane %v586, 5
      %v589 = vsel %vm517, %v584, %v588
      %v591 = vshrl.u32 %v470, 16
      %v593 = vrot.slane %v591, 4
      %v594 = vshll.u32 %v470, 16
      %v596 = vrot.slane %v594, 5
      %v597 = vor.u32 %v593, %v596
      %v598 = vrot.slane %v597, 4
      %v600 = vshll.u32 %v471, 16
      %v602 = vrot.slane %v600, 5
      %v603 = vsel %vm517, %v598, %v602
      %v604 = vshrl.u32 %v471, 16
      %v606 = vrot.slane %v604, 4
      %v607 = vor.u32 %v606, %v602
      %v608 = vrot.slane %v607, 4
      %v610 = vshll.u32 %v472, 16
      %v612 = vrot.slane %v610, 5
      %v613 = vsel %vm517, %v608, %v612
      %v615 = vshrl.u32 %v473, 16
      %v617 = vrot.slane %v615, 4
      %v618 = vshll.u32 %v473, 16
      %v620 = vrot.slane %v618, 5
      %v621 = vor.u32 %v617, %v620
      %v622 = vrot.slane %v621, 4
      %v624 = vshll.u32 %v474, 16
      %v626 = vrot.slane %v624, 5
      %v627 = vsel %vm517, %v622, %v626
      %v628 = vshrl.u32 %v474, 16
      %v630 = vrot.slane %v628, 4
      %v631 = vor.u32 %v630, %v626
      %v632 = vrot.slane %v631, 4
      %v634 = vshll.u32 %v475, 16
      %v636 = vrot.slane %v634, 5
      %v637 = vsel %vm517, %v632, %v636
      %v639 = vshrl.u32 %v476, 16
      %v641 = vrot.slane %v639, 4
      %v642 = vshll.u32 %v476, 16
      %v644 = vrot.slane %v642, 5
      %v645 = vor.u32 %v641, %v644
      %v646 = vrot.slane %v645, 4
      %v648 = vshll.u32 %v477, 16
      %v650 = vrot.slane %v648, 5
      %v651 = vsel %vm517, %v646, %v650
      %v652 = vshrl.u32 %v477, 16
      %v654 = vrot.slane %v652, 4
      %v655 = vor.u32 %v654, %v650
      %v656 = vrot.slane %v655, 4
      %v658 = vshll.u32 %v478, 16
      %v660 = vrot.slane %v658, 5
      %v661 = vsel %vm517, %v656, %v660
      %v663 = vshrl.u32 %v479, 16
      %v665 = vrot.slane %v663, 4
      %v666 = vshll.u32 %v479, 16
      %v668 = vrot.slane %v666, 5
      %v669 = vor.u32 %v665, %v668
      %v670 = vrot.slane %v669, 4
      %v672 = vshll.u32 %v480, 16
      %v674 = vrot.slane %v672, 5
      %v675 = vsel %vm517, %v670, %v674
      %v676 = vshrl.u32 %v480, 16
      %v678 = vrot.slane %v676, 4
      %v679 = vor.u32 %v678, %v674
      %v680 = vrot.slane %v679, 4
      %v682 = vshll.u32 %v481, 16
      %v684 = vrot.slane %v682, 5
      %v685 = vsel %vm517, %v680, %v684
      %v687 = vshrl.u32 %v482, 16
      %v689 = vrot.slane %v687, 4
      %v690 = vshll.u32 %v482, 16
      %v692 = vrot.slane %v690, 5
      %v693 = vor.u32 %v689, %v692
      %v694 = vrot.slane %v693, 4
      %v696 = vshll.u32 %v483, 16
      %v698 = vrot.slane %v696, 5
      %v699 = vsel %vm517, %v694, %v698
      %v700 = vshrl.u32 %v483, 16
      %v702 = vrot.slane %v700, 4
      %v703 = vor.u32 %v702, %v698
      %v704 = vrot.slane %v703, 4
      %v706 = vshll.u32 %v484, 16
      %v708 = vrot.slane %v706, 5
      %v709 = vsel %vm517, %v704, %v708
      %v711 = vshrl.u32 %v485, 16
      %v713 = vrot.slane %v711, 4
      %v714 = vshll.u32 %v485, 16
      %v716 = vrot.slane %v714, 5
      %v717 = vor.u32 %v713, %v716
      %v718 = vrot.slane %v717, 4
      %v720 = vshll.u32 %v486, 16
      %v722 = vrot.slane %v720, 5
      %v723 = vsel %vm517, %v718, %v722
      %v724 = vshrl.u32 %v486, 16
      %v726 = vrot.slane %v724, 4
      %v727 = vor.u32 %v726, %v722
      %v728 = vrot.slane %v727, 4
      %v730 = vshll.u32 %v487, 16
      %v732 = vrot.slane %v730, 5
      %v733 = vsel %vm517, %v728, %v732
      %v735 = vshrl.u32 %v488, 16
      %v737 = vrot.slane %v735, 4
      %v738 = vshll.u32 %v488, 16
      %v740 = vrot.slane %v738, 5
      %v741 = vor.u32 %v737, %v740
      %v742 = vrot.slane %v741, 4
      %v744 = vshll.u32 %v489, 16
      %v746 = vrot.slane %v744, 5
      %v747 = vsel %vm517, %v742, %v746
      %v748 = vshrl.u32 %v489, 16
      %v750 = vrot.slane %v748, 4
      %v751 = vor.u32 %v750, %v746
      %v752 = vrot.slane %v751, 4
      %v754 = vshll.u32 %v490, 16
      %v756 = vrot.slane %v754, 5
      %v757 = vsel %vm517, %v752, %v756
      %v759 = vshrl.u32 %v491, 16
      %v761 = vrot.slane %v759, 4
      %v762 = vshll.u32 %v491, 16
      %v764 = vrot.slane %v762, 5
      %v765 = vor.u32 %v761, %v764
      %v766 = vrot.slane %v765, 4
      %v768 = vshll.u32 %v492, 16
      %v770 = vrot.slane %v768, 5
      %v771 = vsel %vm517, %v766, %v770
      %v772 = vshrl.u32 %v492, 16
      %v774 = vrot.slane %v772, 4
      %v775 = vor.u32 %v774, %v770
      %v776 = vrot.slane %v775, 4
      %v778 = vshll.u32 %v493, 16
      %v780 = vrot.slane %v778, 5
      %v781 = vsel %vm517, %v776, %v780
      %v783 = vshrl.u32 %v494, 16
      %v785 = vrot.slane %v783, 4
      %v786 = vshll.u32 %v494, 16
      %v788 = vrot.slane %v786, 5
      %v789 = vor.u32 %v785, %v788
      %v790 = vrot.slane %v789, 4
      %v792 = vshll.u32 %v495, 16
      %v794 = vrot.slane %v792, 5
      %v795 = vsel %vm517, %v790, %v794
      %v796 = vshrl.u32 %v495, 16
      %v798 = vrot.slane %v796, 4
      %v799 = vor.u32 %v798, %v794
      %v800 = vrot.slane %v799, 4
      %v802 = vshll.u32 %v496, 16
      %v804 = vrot.slane %v802, 5
      %v805 = vsel %vm517, %v800, %v804
      %v807 = vshrl.u32 %v497, 16
      %v809 = vrot.slane %v807, 4
      %v810 = vshll.u32 %v497, 16
      %v812 = vrot.slane %v810, 5
      %v813 = vor.u32 %v809, %v812
      %v814 = vrot.slane %v813, 4
      %v816 = vshll.u32 %v498, 16
      %v818 = vrot.slane %v816, 5
      %v819 = vsel %vm517, %v814, %v818
      %v820 = vshrl.u32 %v498, 16
      %v822 = vrot.slane %v820, 4
      %v823 = vor.u32 %v822, %v818
      %v824 = vrot.slane %v823, 4
      %v826 = vshll.u32 %v499, 16
      %v828 = vrot.slane %v826, 5
      %v829 = vsel %vm517, %v824, %v828
      %v831 = vshrl.u32 %v500, 16
      %v833 = vrot.slane %v831, 4
      %v834 = vshll.u32 %v500, 16
      %v836 = vrot.slane %v834, 5
      %v837 = vor.u32 %v833, %v836
      %v838 = vrot.slane %v837, 4
      %v840 = vshll.u32 %v501, 16
      %v842 = vrot.slane %v840, 5
      %v843 = vsel %vm517, %v838, %v842
      %v844 = vshrl.u32 %v501, 16
      %v846 = vrot.slane %v844, 4
      %v847 = vor.u32 %v846, %v842
      %v848 = vrot.slane %v847, 4
      %v850 = vshll.u32 %v502, 16
      %v852 = vrot.slane %v850, 5
      %v853 = vsel %vm517, %v848, %v852
      %v855 = vshrl.u32 %v503, 16
      %v857 = vrot.slane %v855, 4
      %v858 = vshll.u32 %v503, 16
      %v860 = vrot.slane %v858, 5
      %v861 = vor.u32 %v857, %v860
      %v862 = vrot.slane %v861, 4
      %v864 = vshll.u32 %v504, 16
      %v866 = vrot.slane %v864, 5
      %v867 = vsel %vm517, %v862, %v866
      %v868 = vshrl.u32 %v504, 16
      %v870 = vrot.slane %v868, 4
      %v871 = vor.u32 %v870, %v866
      %v872 = vrot.slane %v871, 4
      %v874 = vshll.u32 %v505, 16
      %v876 = vrot.slane %v874, 5
      %v877 = vsel %vm517, %v872, %v876
      %v879 = vshrl.u32 %v506, 16
      %v881 = vrot.slane %v879, 4
      %v882 = vshll.u32 %v506, 16
      %v884 = vrot.slane %v882, 5
      %v885 = vor.u32 %v881, %v884
      %v886 = vrot.slane %v885, 4
      %v888 = vshll.u32 %v507, 16
      %v890 = vrot.slane %v888, 5
      %v891 = vsel %vm517, %v886, %v890
      %v892 = vshrl.u32 %v507, 16
      %v894 = vrot.slane %v892, 4
      %v895 = vor.u32 %v894, %v890
      %v896 = vrot.slane %v895, 4
      %v898 = vshll.u32 %v508, 16
      %v900 = vrot.slane %v898, 5
      %v901 = vsel %vm517, %v896, %v900
      %v902 = vunpack.c.l.b16 %v531
      %v903 = vunpack.c.l.b16 %v541
      %v904 = vunpack.c.l.b16 %v555
      %v905 = vunpack.c.l.b16 %v565
      %v906 = vunpack.c.l.b16 %v579
      %v907 = vunpack.c.l.b16 %v589
      %v908 = vunpack.c.l.b16 %v603
      %v909 = vunpack.c.l.b16 %v613
      %v910 = vunpack.c.l.b16 %v627
      %v911 = vunpack.c.l.b16 %v637
      %v912 = vunpack.c.l.b16 %v651
      %v913 = vunpack.c.l.b16 %v661
      %v914 = vunpack.c.l.b16 %v675
      %v915 = vunpack.c.l.b16 %v685
      %v916 = vunpack.c.l.b16 %v699
      %v917 = vunpack.c.l.b16 %v709
      %v918 = vunpack.c.l.b16 %v723
      %v919 = vunpack.c.l.b16 %v733
      %v920 = vunpack.c.l.b16 %v747
      %v921 = vunpack.c.l.b16 %v757
      %v922 = vunpack.c.l.b16 %v771
      %v923 = vunpack.c.l.b16 %v781
      %v924 = vunpack.c.l.b16 %v795
      %v925 = vunpack.c.l.b16 %v805
      %v926 = vunpack.c.l.b16 %v819
      %v927 = vunpack.c.l.b16 %v829
      %v928 = vunpack.c.l.b16 %v843
      %v929 = vunpack.c.l.b16 %v853
      %v930 = vunpack.c.l.b16 %v867
      %v931 = vunpack.c.l.b16 %v877
      %v932 = vunpack.c.l.b16 %v891
      %v933 = vunpack.c.l.b16 %v901
      %v934 = vpack.c.b16 %v903, %v902
      %v935 = vpack.c.b16 %v905, %v904
      %v936 = vpack.c.b16 %v907, %v906
      %v937 = vpack.c.b16 %v909, %v908
      %v938 = vpack.c.b16 %v911, %v910
      %v939 = vpack.c.b16 %v913, %v912
      %v940 = vpack.c.b16 %v915, %v914
      %v941 = vpack.c.b16 %v917, %v916
      %v942 = vpack.c.b16 %v919, %v918
      %v943 = vpack.c.b16 %v921, %v920
      %v944 = vpack.c.b16 %v923, %v922
      %v945 = vpack.c.b16 %v925, %v924
      %v946 = vpack.c.b16 %v927, %v926
      %v947 = vpack.c.b16 %v929, %v928
      %v948 = vpack.c.b16 %v931, %v930
      %v949 = vpack.c.b16 %v933, %v932
      %950 = vrot.lane.b32.xlu0 %v934, 8
      %v951 = vpop.permute.xlu0 %950
      %952 = vrot.lane.b32.xlu0 %v935, 8
      %v953 = vpop.permute.xlu0 %952
      %954 = vrot.lane.b32.xlu0 %v936, 8
      %v955 = vpop.permute.xlu0 %954
      %956 = vrot.lane.b32.xlu0 %v937, 8
      %v957 = vpop.permute.xlu0 %956
      %958 = vrot.lane.b32.xlu0 %v938, 8
      %v959 = vpop.permute.xlu0 %958
      %960 = vrot.lane.b32.xlu0 %v939, 8
      %v961 = vpop.permute.xlu0 %960
      %962 = vrot.lane.b32.xlu0 %v940, 8
      %v963 = vpop.permute.xlu0 %962
      %964 = vrot.lane.b32.xlu0 %v941, 8
      %v965 = vpop.permute.xlu0 %964
      %966 = vrot.lane.b32.xlu0 %v942, 8
      %v967 = vpop.permute.xlu0 %966
      %968 = vrot.lane.b32.xlu0 %v943, 8
      %v969 = vpop.permute.xlu0 %968
      %970 = vrot.lane.b32.xlu0 %v944, 8
      %v971 = vpop.permute.xlu0 %970
      %972 = vrot.lane.b32.xlu0 %v945, 8
      %v973 = vpop.permute.xlu0 %972
      %974 = vrot.lane.b32.xlu0 %v946, 8
      %v975 = vpop.permute.xlu0 %974
      %976 = vrot.lane.b32.xlu0 %v947, 8
      %v977 = vpop.permute.xlu0 %976
      %978 = vrot.lane.b32.xlu0 %v948, 8
      %v979 = vpop.permute.xlu0 %978
      %980 = vrot.lane.b32.xlu0 %v949, 8
      %v981 = vpop.permute.xlu0 %980
      %vm998 = vcmask 130112
      %999 = vst.msk [vmem:[#allocation2] sm:$0xff] %vm998, %v951
      %1000 = vst.msk [vmem:[#allocation2 + $0x8] sm:$0xff] %vm998, %v953
      %1001 = vst.msk [vmem:[#allocation2 + $0x10] sm:$0xff] %vm998, %v955
      %1002 = vst.msk [vmem:[#allocation2 + $0x18] sm:$0xff] %vm998, %v957
      %1003 = vst.msk [vmem:[#allocation2 + $0x20] sm:$0xff] %vm998, %v959
      %1004 = vst.msk [vmem:[#allocation2 + $0x28] sm:$0xff] %vm998, %v961
      %1005 = vst.msk [vmem:[#allocation2 + $0x30] sm:$0xff] %vm998, %v963
      %1006 = vst.msk [vmem:[#allocation2 + $0x38] sm:$0xff] %vm998, %v965
      %1007 = vst.msk [vmem:[#allocation2 + $0x40] sm:$0xff] %vm998, %v967
      %1008 = vst.msk [vmem:[#allocation2 + $0x48] sm:$0xff] %vm998, %v969
      %1009 = vst.msk [vmem:[#allocation2 + $0x50] sm:$0xff] %vm998, %v971
      %1010 = vst.msk [vmem:[#allocation2 + $0x58] sm:$0xff] %vm998, %v973
      %1011 = vst.msk [vmem:[#allocation2 + $0x60] sm:$0xff] %vm998, %v975
      %1012 = vst.msk [vmem:[#allocation2 + $0x68] sm:$0xff] %vm998, %v977
      %1013 = vst.msk [vmem:[#allocation2 + $0x70] sm:$0xff] %vm998, %v979
      %1014 = vst.msk [vmem:[#allocation2 + $0x78] sm:$0xff] %vm998, %v981
      %v1016 = vshrl.u32 %v509, 16
      %v1018 = vrot.slane %v1016, 4
      %v1019 = vshll.u32 %v509, 16
      %v1021 = vrot.slane %v1019, 5
      %v1022 = vor.u32 %v1018, %v1021
      %v1023 = vrot.slane %v1022, 4
      %v1025 = vshll.u32 %v510, 16
      %v1027 = vrot.slane %v1025, 5
      %v1028 = vsel %vm517, %v1023, %v1027
      %v1029 = vshrl.u32 %v510, 16
      %v1031 = vrot.slane %v1029, 4
      %v1032 = vor.u32 %v1031, %v1027
      %v1033 = vrot.slane %v1032, 4
      %v1035 = vshll.u32 %v511, 16
      %v1037 = vrot.slane %v1035, 5
      %v1038 = vsel %vm517, %v1033, %v1037
      %v1039 = vunpack.c.l.b16 %v1028
      %v1040 = vunpack.c.l.b16 %v1038
      %v1041 = vpack.c.b16 %v1040, %v1039
      %1042 = vrot.lane.b32.xlu0 %v935, 32
      %v1043 = vpop.permute.xlu0 %1042
      %1044 = vrot.lane.b32.xlu0 %v936, 32
      %v1045 = vpop.permute.xlu0 %1044
      %1046 = vrot.lane.b32.xlu0 %v937, 32
      %v1047 = vpop.permute.xlu0 %1046
      %1048 = vrot.lane.b32.xlu0 %v938, 32
      %v1049 = vpop.permute.xlu0 %1048
      %1050 = vrot.lane.b32.xlu0 %v939, 32
      %v1051 = vpop.permute.xlu0 %1050
      %1052 = vrot.lane.b32.xlu0 %v940, 32
      %v1053 = vpop.permute.xlu0 %1052
      %1054 = vrot.lane.b32.xlu0 %v941, 32
      %v1055 = vpop.permute.xlu0 %1054
      %1056 = vrot.lane.b32.xlu0 %v942, 32
      %v1057 = vpop.permute.xlu0 %1056
      %1058 = vrot.lane.b32.xlu0 %v943, 32
      %v1059 = vpop.permute.xlu0 %1058
      %1060 = vrot.lane.b32.xlu0 %v944, 32
      %v1061 = vpop.permute.xlu0 %1060
      %1062 = vrot.lane.b32.xlu0 %v945, 32
      %v1063 = vpop.permute.xlu0 %1062
      %1064 = vrot.lane.b32.xlu0 %v946, 32
      %v1065 = vpop.permute.xlu0 %1064
      %1066 = vrot.lane.b32.xlu0 %v947, 32
      %v1067 = vpop.permute.xlu0 %1066
      %1068 = vrot.lane.b32.xlu0 %v948, 32
      %v1069 = vpop.permute.xlu0 %1068
      %1070 = vrot.lane.b32.xlu0 %v949, 32
      %v1071 = vpop.permute.xlu0 %1070
      %1072 = vrot.lane.b32.xlu0 %v1041, 32
      %v1073 = vpop.permute.xlu0 %1072
      %vm1090 = vcmask 326912
      %1091 = vst.msk [vmem:[#allocation2] sm:$0xff] %vm1090, %v1043
      %1092 = vst.msk [vmem:[#allocation2 + $0x8] sm:$0xff] %vm1090, %v1045
      %1093 = vst.msk [vmem:[#allocation2 + $0x10] sm:$0xff] %vm1090, %v1047
      %1094 = vst.msk [vmem:[#allocation2 + $0x18] sm:$0xff] %vm1090, %v1049
      %1095 = vst.msk [vmem:[#allocation2 + $0x20] sm:$0xff] %vm1090, %v1051
      %1096 = vst.msk [vmem:[#allocation2 + $0x28] sm:$0xff] %vm1090, %v1053
      %1097 = vst.msk [vmem:[#allocation2 + $0x30] sm:$0xff] %vm1090, %v1055
      %1098 = vst.msk [vmem:[#allocation2 + $0x38] sm:$0xff] %vm1090, %v1057
      %1099 = vst.msk [vmem:[#allocation2 + $0x40] sm:$0xff] %vm1090, %v1059
      %1100 = vst.msk [vmem:[#allocation2 + $0x48] sm:$0xff] %vm1090, %v1061
      %1101 = vst.msk [vmem:[#allocation2 + $0x50] sm:$0xff] %vm1090, %v1063
      %1102 = vst.msk [vmem:[#allocation2 + $0x58] sm:$0xff] %vm1090, %v1065
      %1103 = vst.msk [vmem:[#allocation2 + $0x60] sm:$0xff] %vm1090, %v1067
      %1104 = vst.msk [vmem:[#allocation2 + $0x68] sm:$0xff] %vm1090, %v1069
      %1105 = vst.msk [vmem:[#allocation2 + $0x70] sm:$0xff] %vm1090, %v1071
      %1106 = vst.msk [vmem:[#allocation2 + $0x78] sm:$0xff] %vm1090, %v1073
      %v1108 = vshrl.u32 %v512, 16
      %v1110 = vrot.slane %v1108, 4
      %v1111 = vshll.u32 %v512, 16
      %v1113 = vrot.slane %v1111, 5
      %v1114 = vor.u32 %v1110, %v1113
      %v1115 = vrot.slane %v1114, 4
      %v1117 = vshll.u32 %v513, 16
      %v1119 = vrot.slane %v1117, 5
      %v1120 = vsel %vm517, %v1115, %v1119
      %v1121 = vshrl.u32 %v513, 16
      %v1123 = vrot.slane %v1121, 4
      %v1124 = vor.u32 %v1123, %v1119
      %v1125 = vrot.slane %v1124, 4
      %v1127 = vshll.u32 %v514, 16
      %v1129 = vrot.slane %v1127, 5
      %v1130 = vsel %vm517, %v1125, %v1129
      %v1131 = vunpack.c.l.b16 %v1120
      %v1132 = vunpack.c.l.b16 %v1130
      %v1133 = vpack.c.b16 %v1132, %v1131
      %1134 = vrot.lane.b32.xlu0 %v936, 56
      %v1135 = vpop.permute.xlu0 %1134
      %1136 = vrot.lane.b32.xlu0 %v937, 56
      %v1137 = vpop.permute.xlu0 %1136
      %1138 = vrot.lane.b32.xlu0 %v938, 56
      %v1139 = vpop.permute.xlu0 %1138
      %1140 = vrot.lane.b32.xlu0 %v939, 56
      %v1141 = vpop.permute.xlu0 %1140
      %1142 = vrot.lane.b32.xlu0 %v940, 56
      %v1143 = vpop.permute.xlu0 %1142
      %1144 = vrot.lane.b32.xlu0 %v941, 56
      %v1145 = vpop.permute.xlu0 %1144
      %1146 = vrot.lane.b32.xlu0 %v942, 56
      %v1147 = vpop.permute.xlu0 %1146
      %1148 = vrot.lane.b32.xlu0 %v943, 56
      %v1149 = vpop.permute.xlu0 %1148
      %1150 = vrot.lane.b32.xlu0 %v944, 56
      %v1151 = vpop.permute.xlu0 %1150
      %1152 = vrot.lane.b32.xlu0 %v945, 56
      %v1153 = vpop.permute.xlu0 %1152
      %1154 = vrot.lane.b32.xlu0 %v946, 56
      %v1155 = vpop.permute.xlu0 %1154
      %1156 = vrot.lane.b32.xlu0 %v947, 56
      %v1157 = vpop.permute.xlu0 %1156
      %1158 = vrot.lane.b32.xlu0 %v948, 56
      %v1159 = vpop.permute.xlu0 %1158
      %1160 = vrot.lane.b32.xlu0 %v949, 56
      %v1161 = vpop.permute.xlu0 %1160
      %1162 = vrot.lane.b32.xlu0 %v1041, 56
      %v1163 = vpop.permute.xlu0 %1162
      %1164 = vrot.lane.b32.xlu0 %v1133, 56
      %v1165 = vpop.permute.xlu0 %1164
      %vm1182 = vcmask 523712
      %1183 = vst.msk [vmem:[#allocation2] sm:$0xff] %vm1182, %v1135
      %1184 = vst.msk [vmem:[#allocation2 + $0x8] sm:$0xff] %vm1182, %v1137
      %1185 = vst.msk [vmem:[#allocation2 + $0x10] sm:$0xff] %vm1182, %v1139
      %1186 = vst.msk [vmem:[#allocation2 + $0x18] sm:$0xff] %vm1182, %v1141
      %1187 = vst.msk [vmem:[#allocation2 + $0x20] sm:$0xff] %vm1182, %v1143
      %1188 = vst.msk [vmem:[#allocation2 + $0x28] sm:$0xff] %vm1182, %v1145
      %1189 = vst.msk [vmem:[#allocation2 + $0x30] sm:$0xff] %vm1182, %v1147
      %1190 = vst.msk [vmem:[#allocation2 + $0x38] sm:$0xff] %vm1182, %v1149
      %1191 = vst.msk [vmem:[#allocation2 + $0x40] sm:$0xff] %vm1182, %v1151
      %1192 = vst.msk [vmem:[#allocation2 + $0x48] sm:$0xff] %vm1182, %v1153
      %1193 = vst.msk [vmem:[#allocation2 + $0x50] sm:$0xff] %vm1182, %v1155
      %1194 = vst.msk [vmem:[#allocation2 + $0x58] sm:$0xff] %vm1182, %v1157
      %1195 = vst.msk [vmem:[#allocation2 + $0x60] sm:$0xff] %vm1182, %v1159
      %1196 = vst.msk [vmem:[#allocation2 + $0x68] sm:$0xff] %vm1182, %v1161
      %1197 = vst.msk [vmem:[#allocation2 + $0x70] sm:$0xff] %vm1182, %v1163
      %1198 = vst.msk [vmem:[#allocation2 + $0x78] sm:$0xff] %vm1182, %v1165
      %v1199 = vld [vmem:[%s165] sm:$0xe]
      %v1200 = vld [vmem:[%s165 + $0x4] sm:$0xf]
      %v1201 = vld [vmem:[%s165 + $0x8] sm:$0x1]
      %v1202 = vld [vmem:[%s165 + $0xc] sm:$0xe]
      %v1203 = vld [vmem:[%s165 + $0x10] sm:$0xf]
      %v1204 = vld [vmem:[%s165 + $0x14] sm:$0x1]
      %v1205 = vld [vmem:[%s165 + $0x18] sm:$0xe]
      %v1206 = vld [vmem:[%s165 + $0x1c] sm:$0xf]
      %v1207 = vld [vmem:[%s165 + $0x20] sm:$0x1]
      %v1208 = vld [vmem:[%s165 + $0x24] sm:$0xe]
      %v1209 = vld [vmem:[%s165 + $0x28] sm:$0xf]
      %v1210 = vld [vmem:[%s165 + $0x2c] sm:$0x1]
      %v1211 = vld [vmem:[%s165 + $0x30] sm:$0xe]
      %v1212 = vld [vmem:[%s165 + $0x34] sm:$0xf]
      %v1213 = vld [vmem:[%s165 + $0x38] sm:$0x1]
      %v1214 = vld [vmem:[%s165 + $0x3c] sm:$0xe]
      %v1215 = vld [vmem:[%s165 + $0x40] sm:$0xf]
      %v1216 = vld [vmem:[%s165 + $0x44] sm:$0x1]
      %v1217 = vld [vmem:[%s165 + $0x48] sm:$0xe]
      %v1218 = vld [vmem:[%s165 + $0x4c] sm:$0xf]
      %v1219 = vld [vmem:[%s165 + $0x50] sm:$0x1]
      %v1220 = vld [vmem:[%s165 + $0x54] sm:$0xe]
      %v1221 = vld [vmem:[%s165 + $0x58] sm:$0xf]
      %v1222 = vld [vmem:[%s165 + $0x5c] sm:$0x1]
      %v1223 = vld [vmem:[%s165 + $0x60] sm:$0xe]
      %v1224 = vld [vmem:[%s165 + $0x64] sm:$0xf]
      %v1225 = vld [vmem:[%s165 + $0x68] sm:$0x1]
      %v1226 = vld [vmem:[%s165 + $0x6c] sm:$0xe]
      %v1227 = vld [vmem:[%s165 + $0x70] sm:$0xf]
      %v1228 = vld [vmem:[%s165 + $0x74] sm:$0x1]
      %v1229 = vld [vmem:[%s165 + $0x78] sm:$0xe]
      %v1230 = vld [vmem:[%s165 + $0x7c] sm:$0xf]
      %v1231 = vld [vmem:[%s165 + $0x80] sm:$0x1]
      %v1232 = vld [vmem:[%s165 + $0x84] sm:$0xe]
      %v1233 = vld [vmem:[%s165 + $0x88] sm:$0xf]
      %v1234 = vld [vmem:[%s165 + $0x8c] sm:$0x1]
      %v1235 = vld [vmem:[%s165 + $0x90] sm:$0xe]
      %v1236 = vld [vmem:[%s165 + $0x94] sm:$0xf]
      %v1237 = vld [vmem:[%s165 + $0x98] sm:$0x1]
      %v1238 = vld [vmem:[%s165 + $0x9c] sm:$0xe]
      %v1239 = vld [vmem:[%s165 + $0xa0] sm:$0xf]
      %v1240 = vld [vmem:[%s165 + $0xa4] sm:$0x1]
      %v1241 = vld [vmem:[%s165 + $0xa8] sm:$0xe]
      %v1242 = vld [vmem:[%s165 + $0xac] sm:$0xf]
      %v1243 = vld [vmem:[%s165 + $0xb0] sm:$0x1]
      %v1244 = vld [vmem:[%s165 + $0xb4] sm:$0xe]
      %v1245 = vld [vmem:[%s165 + $0xb8] sm:$0xf]
      %v1246 = vld [vmem:[%s165 + $0xbc] sm:$0x1]
      %v1247 = vld [vmem:[%s165 + $0xc0] sm:$0xe]
      %v1248 = vld [vmem:[%s165 + $0xc4] sm:$0xf]
      %v1249 = vld [vmem:[%s165 + $0xc8] sm:$0x1]
      %v1250 = vld [vmem:[%s165 + $0xcc] sm:$0xe]
      %v1251 = vld [vmem:[%s165 + $0xd0] sm:$0xf]
      %v1252 = vld [vmem:[%s165 + $0xd4] sm:$0x1]
      %vm1301 = vcmask 1042432
      %vm1302 = vcmask 1046532
      %vm1303 = vmor %vm1301, %vm1302
      %v1304 = vrot.slane %v1199, 5
      %v1305 = vrot.slane %v1304, 4
      %v1306 = vrot.slane %v1200, 5
      %v1307 = vsel %vm1303, %v1305, %v1306
      %v1308 = vrot.slane %v1306, 4
      %v1309 = vrot.slane %v1201, 5
      %v1310 = vsel %vm1303, %v1308, %v1309
      %v1311 = vrot.slane %v1202, 5
      %v1312 = vrot.slane %v1311, 4
      %v1313 = vrot.slane %v1203, 5
      %v1314 = vsel %vm1303, %v1312, %v1313
      %v1315 = vrot.slane %v1313, 4
      %v1316 = vrot.slane %v1204, 5
      %v1317 = vsel %vm1303, %v1315, %v1316
      %v1318 = vrot.slane %v1205, 5
      %v1319 = vrot.slane %v1318, 4
      %v1320 = vrot.slane %v1206, 5
      %v1321 = vsel %vm1303, %v1319, %v1320
      %v1322 = vrot.slane %v1320, 4
      %v1323 = vrot.slane %v1207, 5
      %v1324 = vsel %vm1303, %v1322, %v1323
      %v1325 = vrot.slane %v1208, 5
      %v1326 = vrot.slane %v1325, 4
      %v1327 = vrot.slane %v1209, 5
      %v1328 = vsel %vm1303, %v1326, %v1327
      %v1329 = vrot.slane %v1327, 4
      %v1330 = vrot.slane %v1210, 5
      %v1331 = vsel %vm1303, %v1329, %v1330
      %v1332 = vrot.slane %v1211, 5
      %v1333 = vrot.slane %v1332, 4
      %v1334 = vrot.slane %v1212, 5
      %v1335 = vsel %vm1303, %v1333, %v1334
      %v1336 = vrot.slane %v1334, 4
      %v1337 = vrot.slane %v1213, 5
      %v1338 = vsel %vm1303, %v1336, %v1337
      %v1339 = vrot.slane %v1214, 5
      %v1340 = vrot.slane %v1339, 4
      %v1341 = vrot.slane %v1215, 5
      %v1342 = vsel %vm1303, %v1340, %v1341
      %v1343 = vrot.slane %v1341, 4
      %v1344 = vrot.slane %v1216, 5
      %v1345 = vsel %vm1303, %v1343, %v1344
      %v1346 = vrot.slane %v1217, 5
      %v1347 = vrot.slane %v1346, 4
      %v1348 = vrot.slane %v1218, 5
      %v1349 = vsel %vm1303, %v1347, %v1348
      %v1350 = vrot.slane %v1348, 4
      %v1351 = vrot.slane %v1219, 5
      %v1352 = vsel %vm1303, %v1350, %v1351
      %v1353 = vrot.slane %v1220, 5
      %v1354 = vrot.slane %v1353, 4
      %v1355 = vrot.slane %v1221, 5
      %v1356 = vsel %vm1303, %v1354, %v1355
      %v1357 = vrot.slane %v1355, 4
      %v1358 = vrot.slane %v1222, 5
      %v1359 = vsel %vm1303, %v1357, %v1358
      %v1360 = vrot.slane %v1223, 5
      %v1361 = vrot.slane %v1360, 4
      %v1362 = vrot.slane %v1224, 5
      %v1363 = vsel %vm1303, %v1361, %v1362
      %v1364 = vrot.slane %v1362, 4
      %v1365 = vrot.slane %v1225, 5
      %v1366 = vsel %vm1303, %v1364, %v1365
      %v1367 = vrot.slane %v1226, 5
      %v1368 = vrot.slane %v1367, 4
      %v1369 = vrot.slane %v1227, 5
      %v1370 = vsel %vm1303, %v1368, %v1369
      %v1371 = vrot.slane %v1369, 4
      %v1372 = vrot.slane %v1228, 5
      %v1373 = vsel %vm1303, %v1371, %v1372
      %v1374 = vrot.slane %v1229, 5
      %v1375 = vrot.slane %v1374, 4
      %v1376 = vrot.slane %v1230, 5
      %v1377 = vsel %vm1303, %v1375, %v1376
      %v1378 = vrot.slane %v1376, 4
      %v1379 = vrot.slane %v1231, 5
      %v1380 = vsel %vm1303, %v1378, %v1379
      %v1381 = vrot.slane %v1232, 5
      %v1382 = vrot.slane %v1381, 4
      %v1383 = vrot.slane %v1233, 5
      %v1384 = vsel %vm1303, %v1382, %v1383
      %v1385 = vrot.slane %v1383, 4
      %v1386 = vrot.slane %v1234, 5
      %v1387 = vsel %vm1303, %v1385, %v1386
      %v1388 = vrot.slane %v1235, 5
      %v1389 = vrot.slane %v1388, 4
      %v1390 = vrot.slane %v1236, 5
      %v1391 = vsel %vm1303, %v1389, %v1390
      %v1392 = vrot.slane %v1390, 4
      %v1393 = vrot.slane %v1237, 5
      %v1394 = vsel %vm1303, %v1392, %v1393
      %v1395 = vrot.slane %v1238, 5
      %v1396 = vrot.slane %v1395, 4
      %v1397 = vrot.slane %v1239, 5
      %v1398 = vsel %vm1303, %v1396, %v1397
      %v1399 = vrot.slane %v1397, 4
      %v1400 = vrot.slane %v1240, 5
      %v1401 = vsel %vm1303, %v1399, %v1400
      %v1402 = vrot.slane %v1241, 5
      %v1403 = vrot.slane %v1402, 4
      %v1404 = vrot.slane %v1242, 5
      %v1405 = vsel %vm1303, %v1403, %v1404
      %v1406 = vrot.slane %v1404, 4
      %v1407 = vrot.slane %v1243, 5
      %v1408 = vsel %vm1303, %v1406, %v1407
      %v1409 = vrot.slane %v1244, 5
      %v1410 = vrot.slane %v1409, 4
      %v1411 = vrot.slane %v1245, 5
      %v1412 = vsel %vm1303, %v1410, %v1411
      %v1413 = vrot.slane %v1411, 4
      %v1414 = vrot.slane %v1246, 5
      %v1415 = vsel %vm1303, %v1413, %v1414
      %v1416 = vunpack.c.l.b16 %v1307
      %v1417 = vunpack.c.l.b16 %v1310
      %v1418 = vunpack.c.l.b16 %v1314
      %v1419 = vunpack.c.l.b16 %v1317
      %v1420 = vunpack.c.l.b16 %v1321
      %v1421 = vunpack.c.l.b16 %v1324
      %v1422 = vunpack.c.l.b16 %v1328
      %v1423 = vunpack.c.l.b16 %v1331
      %v1424 = vunpack.c.l.b16 %v1335
      %v1425 = vunpack.c.l.b16 %v1338
      %v1426 = vunpack.c.l.b16 %v1342
      %v1427 = vunpack.c.l.b16 %v1345
      %v1428 = vunpack.c.l.b16 %v1349
      %v1429 = vunpack.c.l.b16 %v1352
      %v1430 = vunpack.c.l.b16 %v1356
      %v1431 = vunpack.c.l.b16 %v1359
      %v1432 = vunpack.c.l.b16 %v1363
      %v1433 = vunpack.c.l.b16 %v1366
      %v1434 = vunpack.c.l.b16 %v1370
      %v1435 = vunpack.c.l.b16 %v1373
      %v1436 = vunpack.c.l.b16 %v1377
      %v1437 = vunpack.c.l.b16 %v1380
      %v1438 = vunpack.c.l.b16 %v1384
      %v1439 = vunpack.c.l.b16 %v1387
      %v1440 = vunpack.c.l.b16 %v1391
      %v1441 = vunpack.c.l.b16 %v1394
      %v1442 = vunpack.c.l.b16 %v1398
      %v1443 = vunpack.c.l.b16 %v1401
      %v1444 = vunpack.c.l.b16 %v1405
      %v1445 = vunpack.c.l.b16 %v1408
      %v1446 = vunpack.c.l.b16 %v1412
      %v1447 = vunpack.c.l.b16 %v1415
      %v1448 = vpack.c.b16 %v1417, %v1416
      %v1449 = vpack.c.b16 %v1419, %v1418
      %v1450 = vpack.c.b16 %v1421, %v1420
      %v1451 = vpack.c.b16 %v1423, %v1422
      %v1452 = vpack.c.b16 %v1425, %v1424
      %v1453 = vpack.c.b16 %v1427, %v1426
      %v1454 = vpack.c.b16 %v1429, %v1428
      %v1455 = vpack.c.b16 %v1431, %v1430
      %v1456 = vpack.c.b16 %v1433, %v1432
      %v1457 = vpack.c.b16 %v1435, %v1434
      %v1458 = vpack.c.b16 %v1437, %v1436
      %v1459 = vpack.c.b16 %v1439, %v1438
      %v1460 = vpack.c.b16 %v1441, %v1440
      %v1461 = vpack.c.b16 %v1443, %v1442
      %v1462 = vpack.c.b16 %v1445, %v1444
      %v1463 = vpack.c.b16 %v1447, %v1446
      %1464 = vrot.lane.b32.xlu0 %v1448, 16
      %v1465 = vpop.permute.xlu0 %1464
      %1466 = vrot.lane.b32.xlu0 %v1449, 16
      %v1467 = vpop.permute.xlu0 %1466
      %1468 = vrot.lane.b32.xlu0 %v1450, 16
      %v1469 = vpop.permute.xlu0 %1468
      %1470 = vrot.lane.b32.xlu0 %v1451, 16
      %v1471 = vpop.permute.xlu0 %1470
      %1472 = vrot.lane.b32.xlu0 %v1452, 16
      %v1473 = vpop.permute.xlu0 %1472
      %1474 = vrot.lane.b32.xlu0 %v1453, 16
      %v1475 = vpop.permute.xlu0 %1474
      %1476 = vrot.lane.b32.xlu0 %v1454, 16
      %v1477 = vpop.permute.xlu0 %1476
      %1478 = vrot.lane.b32.xlu0 %v1455, 16
      %v1479 = vpop.permute.xlu0 %1478
      %1480 = vrot.lane.b32.xlu0 %v1456, 16
      %v1481 = vpop.permute.xlu0 %1480
      %1482 = vrot.lane.b32.xlu0 %v1457, 16
      %v1483 = vpop.permute.xlu0 %1482
      %1484 = vrot.lane.b32.xlu0 %v1458, 16
      %v1485 = vpop.permute.xlu0 %1484
      %1486 = vrot.lane.b32.xlu0 %v1459, 16
      %v1487 = vpop.permute.xlu0 %1486
      %1488 = vrot.lane.b32.xlu0 %v1460, 16
      %v1489 = vpop.permute.xlu0 %1488
      %1490 = vrot.lane.b32.xlu0 %v1461, 16
      %v1491 = vpop.permute.xlu0 %1490
      %1492 = vrot.lane.b32.xlu0 %v1462, 16
      %v1493 = vpop.permute.xlu0 %1492
      %1494 = vrot.lane.b32.xlu0 %v1463, 16
      %v1495 = vpop.permute.xlu0 %1494
      %vm1512 = vcmask 195712
      %1513 = vst.msk [vmem:[#allocation2] sm:$0xff] %vm1512, %v1465
      %1514 = vst.msk [vmem:[#allocation2 + $0x8] sm:$0xff] %vm1512, %v1467
      %1515 = vst.msk [vmem:[#allocation2 + $0x10] sm:$0xff] %vm1512, %v1469
      %1516 = vst.msk [vmem:[#allocation2 + $0x18] sm:$0xff] %vm1512, %v1471
      %1517 = vst.msk [vmem:[#allocation2 + $0x20] sm:$0xff] %vm1512, %v1473
      %1518 = vst.msk [vmem:[#allocation2 + $0x28] sm:$0xff] %vm1512, %v1475
      %1519 = vst.msk [vmem:[#allocation2 + $0x30] sm:$0xff] %vm1512, %v1477
      %1520 = vst.msk [vmem:[#allocation2 + $0x38] sm:$0xff] %vm1512, %v1479
      %1521 = vst.msk [vmem:[#allocation2 + $0x40] sm:$0xff] %vm1512, %v1481
      %1522 = vst.msk [vmem:[#allocation2 + $0x48] sm:$0xff] %vm1512, %v1483
      %1523 = vst.msk [vmem:[#allocation2 + $0x50] sm:$0xff] %vm1512, %v1485
      %1524 = vst.msk [vmem:[#allocation2 + $0x58] sm:$0xff] %vm1512, %v1487
      %1525 = vst.msk [vmem:[#allocation2 + $0x60] sm:$0xff] %vm1512, %v1489
      %1526 = vst.msk [vmem:[#allocation2 + $0x68] sm:$0xff] %vm1512, %v1491
      %1527 = vst.msk [vmem:[#allocation2 + $0x70] sm:$0xff] %vm1512, %v1493
      %1528 = vst.msk [vmem:[#allocation2 + $0x78] sm:$0xff] %vm1512, %v1495
      %v1532 = vrot.slane %v1247, 5
      %v1533 = vrot.slane %v1532, 4
      %v1534 = vrot.slane %v1248, 5
      %v1535 = vsel %vm1303, %v1533, %v1534
      %v1536 = vrot.slane %v1534, 4
      %v1537 = vrot.slane %v1249, 5
      %v1538 = vsel %vm1303, %v1536, %v1537
      %v1539 = vunpack.c.l.b16 %v1535
      %v1540 = vunpack.c.l.b16 %v1538
      %v1541 = vpack.c.b16 %v1540, %v1539
      %1542 = vrot.lane.b32.xlu0 %v1449, 40
      %v1543 = vpop.permute.xlu0 %1542
      %1544 = vrot.lane.b32.xlu0 %v1450, 40
      %v1545 = vpop.permute.xlu0 %1544
      %1546 = vrot.lane.b32.xlu0 %v1451, 40
      %v1547 = vpop.permute.xlu0 %1546
      %1548 = vrot.lane.b32.xlu0 %v1452, 40
      %v1549 = vpop.permute.xlu0 %1548
      %1550 = vrot.lane.b32.xlu0 %v1453, 40
      %v1551 = vpop.permute.xlu0 %1550
      %1552 = vrot.lane.b32.xlu0 %v1454, 40
      %v1553 = vpop.permute.xlu0 %1552
      %1554 = vrot.lane.b32.xlu0 %v1455, 40
      %v1555 = vpop.permute.xlu0 %1554
      %1556 = vrot.lane.b32.xlu0 %v1456, 40
      %v1557 = vpop.permute.xlu0 %1556
      %1558 = vrot.lane.b32.xlu0 %v1457, 40
      %v1559 = vpop.permute.xlu0 %1558
      %1560 = vrot.lane.b32.xlu0 %v1458, 40
      %v1561 = vpop.permute.xlu0 %1560
      %1562 = vrot.lane.b32.xlu0 %v1459, 40
      %v1563 = vpop.permute.xlu0 %1562
      %1564 = vrot.lane.b32.xlu0 %v1460, 40
      %v1565 = vpop.permute.xlu0 %1564
      %1566 = vrot.lane.b32.xlu0 %v1461, 40
      %v1567 = vpop.permute.xlu0 %1566
      %1568 = vrot.lane.b32.xlu0 %v1462, 40
      %v1569 = vpop.permute.xlu0 %1568
      %1570 = vrot.lane.b32.xlu0 %v1463, 40
      %v1571 = vpop.permute.xlu0 %1570
      %1572 = vrot.lane.b32.xlu0 %v1541, 40
      %v1573 = vpop.permute.xlu0 %1572
      %vm1590 = vcmask 392512
      %1591 = vst.msk [vmem:[#allocation2] sm:$0xff] %vm1590, %v1543
      %1592 = vst.msk [vmem:[#allocation2 + $0x8] sm:$0xff] %vm1590, %v1545
      %1593 = vst.msk [vmem:[#allocation2 + $0x10] sm:$0xff] %vm1590, %v1547
      %1594 = vst.msk [vmem:[#allocation2 + $0x18] sm:$0xff] %vm1590, %v1549
      %1595 = vst.msk [vmem:[#allocation2 + $0x20] sm:$0xff] %vm1590, %v1551
      %1596 = vst.msk [vmem:[#allocation2 + $0x28] sm:$0xff] %vm1590, %v1553
      %1597 = vst.msk [vmem:[#allocation2 + $0x30] sm:$0xff] %vm1590, %v1555
      %1598 = vst.msk [vmem:[#allocation2 + $0x38] sm:$0xff] %vm1590, %v1557
      %1599 = vst.msk [vmem:[#allocation2 + $0x40] sm:$0xff] %vm1590, %v1559
      %1600 = vst.msk [vmem:[#allocation2 + $0x48] sm:$0xff] %vm1590, %v1561
      %1601 = vst.msk [vmem:[#allocation2 + $0x50] sm:$0xff] %vm1590, %v1563
      %1602 = vst.msk [vmem:[#allocation2 + $0x58] sm:$0xff] %vm1590, %v1565
      %1603 = vst.msk [vmem:[#allocation2 + $0x60] sm:$0xff] %vm1590, %v1567
      %1604 = vst.msk [vmem:[#allocation2 + $0x68] sm:$0xff] %vm1590, %v1569
      %1605 = vst.msk [vmem:[#allocation2 + $0x70] sm:$0xff] %vm1590, %v1571
      %1606 = vst.msk [vmem:[#allocation2 + $0x78] sm:$0xff] %vm1590, %v1573
      %v1610 = vrot.slane %v1250, 5
      %v1611 = vrot.slane %v1610, 4
      %v1612 = vrot.slane %v1251, 5
      %v1613 = vsel %vm1303, %v1611, %v1612
      %v1614 = vrot.slane %v1612, 4
      %v1615 = vrot.slane %v1252, 5
      %v1616 = vsel %vm1303, %v1614, %v1615
      %v1617 = vunpack.c.l.b16 %v1613
      %v1618 = vunpack.c.l.b16 %v1616
      %v1619 = vpack.c.b16 %v1618, %v1617
      %1620 = vrot.lane.b32.xlu0 %v1450, 64
      %v1621 = vpop.permute.xlu0 %1620
      %1622 = vrot.lane.b32.xlu0 %v1451, 64
      %v1623 = vpop.permute.xlu0 %1622
      %1624 = vrot.lane.b32.xlu0 %v1452, 64
      %v1625 = vpop.permute.xlu0 %1624
      %1626 = vrot.lane.b32.xlu0 %v1453, 64
      %v1627 = vpop.permute.xlu0 %1626
      %1628 = vrot.lane.b32.xlu0 %v1454, 64
      %v1629 = vpop.permute.xlu0 %1628
      %1630 = vrot.lane.b32.xlu0 %v1455, 64
      %v1631 = vpop.permute.xlu0 %1630
      %1632 = vrot.lane.b32.xlu0 %v1456, 64
      %v1633 = vpop.permute.xlu0 %1632
      %1634 = vrot.lane.b32.xlu0 %v1457, 64
      %v1635 = vpop.permute.xlu0 %1634
      %1636 = vrot.lane.b32.xlu0 %v1458, 64
      %v1637 = vpop.permute.xlu0 %1636
      %1638 = vrot.lane.b32.xlu0 %v1459, 64
      %v1639 = vpop.permute.xlu0 %1638
      %1640 = vrot.lane.b32.xlu0 %v1460, 64
      %v1641 = vpop.permute.xlu0 %1640
      %1642 = vrot.lane.b32.xlu0 %v1461, 64
      %v1643 = vpop.permute.xlu0 %1642
      %1644 = vrot.lane.b32.xlu0 %v1462, 64
      %v1645 = vpop.permute.xlu0 %1644
      %1646 = vrot.lane.b32.xlu0 %v1463, 64
      %v1647 = vpop.permute.xlu0 %1646
      %1648 = vrot.lane.b32.xlu0 %v1541, 64
      %v1649 = vpop.permute.xlu0 %1648
      %1650 = vrot.lane.b32.xlu0 %v1619, 64
      %v1651 = vpop.permute.xlu0 %1650
      %vm1668 = vcmask 589312
      %1669 = vst.msk [vmem:[#allocation2] sm:$0xff] %vm1668, %v1621
      %1670 = vst.msk [vmem:[#allocation2 + $0x8] sm:$0xff] %vm1668, %v1623
      %1671 = vst.msk [vmem:[#allocation2 + $0x10] sm:$0xff] %vm1668, %v1625
      %1672 = vst.msk [vmem:[#allocation2 + $0x18] sm:$0xff] %vm1668, %v1627
      %1673 = vst.msk [vmem:[#allocation2 + $0x20] sm:$0xff] %vm1668, %v1629
      %1674 = vst.msk [vmem:[#allocation2 + $0x28] sm:$0xff] %vm1668, %v1631
      %1675 = vst.msk [vmem:[#allocation2 + $0x30] sm:$0xff] %vm1668, %v1633
      %1676 = vst.msk [vmem:[#allocation2 + $0x38] sm:$0xff] %vm1668, %v1635
      %1677 = vst.msk [vmem:[#allocation2 + $0x40] sm:$0xff] %vm1668, %v1637
      %1678 = vst.msk [vmem:[#allocation2 + $0x48] sm:$0xff] %vm1668, %v1639
      %1679 = vst.msk [vmem:[#allocation2 + $0x50] sm:$0xff] %vm1668, %v1641
      %1680 = vst.msk [vmem:[#allocation2 + $0x58] sm:$0xff] %vm1668, %v1643
      %1681 = vst.msk [vmem:[#allocation2 + $0x60] sm:$0xff] %vm1668, %v1645
      %1682 = vst.msk [vmem:[#allocation2 + $0x68] sm:$0xff] %vm1668, %v1647
      %1683 = vst.msk [vmem:[#allocation2 + $0x70] sm:$0xff] %vm1668, %v1649
      %1684 = vst.msk [vmem:[#allocation2 + $0x78] sm:$0xff] %vm1668, %v1651
      %v1685 = vld [vmem:[#allocation2] sm:$0xff]
      %v1686 = vld [vmem:[#allocation2 + $0x8] sm:$0xff]
      %v1687 = vld [vmem:[#allocation2 + $0x10] sm:$0xff]
      %v1688 = vld [vmem:[#allocation2 + $0x18] sm:$0xff]
      %v1689 = vld [vmem:[#allocation2 + $0x20] sm:$0xff]
      %v1690 = vld [vmem:[#allocation2 + $0x28] sm:$0xff]
      %v1691 = vld [vmem:[#allocation2 + $0x30] sm:$0xff]
      %v1692 = vld [vmem:[#allocation2 + $0x38] sm:$0xff]
      %v1693 = vld [vmem:[#allocation2 + $0x40] sm:$0xff]
      %v1694 = vld [vmem:[#allocation2 + $0x48] sm:$0xff]
      %v1695 = vld [vmem:[#allocation2 + $0x50] sm:$0xff]
      %v1696 = vld [vmem:[#allocation2 + $0x58] sm:$0xff]
      %v1697 = vld [vmem:[#allocation2 + $0x60] sm:$0xff]
      %v1698 = vld [vmem:[#allocation2 + $0x68] sm:$0xff]
      %v1699 = vld [vmem:[#allocation2 + $0x70] sm:$0xff]
      %v1700 = vld [vmem:[#allocation2 + $0x78] sm:$0xff]
      %v1701 = vld [vmem:[%s1] sm:$0xf]
      %v1702 = vld [vmem:[%s1 + $0x4] sm:$0xf]
      %v1703 = vld [vmem:[%s1 + $0x8] sm:$0xf]
      %v1704 = vld [vmem:[%s1 + $0xc] sm:$0xf]
      %v1705 = vld [vmem:[%s1 + $0x10] sm:$0xf]
      %v1706 = vld [vmem:[%s1 + $0x14] sm:$0xf]
      %v1707 = vld [vmem:[%s1 + $0x18] sm:$0xf]
      %v1708 = vld [vmem:[%s1 + $0x1c] sm:$0xf]
      %v1709 = vld [vmem:[%s1 + $0x20] sm:$0xf]
      %v1710 = vld [vmem:[%s2] sm:$0x1]
      %v1712 = vlaneseq
      %v1713 = vshrl.u32 %v1712, 7
      %v1714 = vsub.s32 0, %v1713
      %v1715 = vrot.slane %v1710, %v1714
      %v1726 = vunpack.c.l.b16 %v1701
      %v1727 = vunpack.c.l.b16 %v1702
      %v1728 = vunpack.c.l.b16 %v1703
      %v1729 = vunpack.c.l.b16 %v1704
      %v1730 = vunpack.c.l.b16 %v1705
      %v1731 = vunpack.c.l.b16 %v1706
      %v1732 = vunpack.c.l.b16 %v1707
      %v1733 = vunpack.c.l.b16 %v1708
      %v1734 = vunpack.c.l.b16 %v1709
      %v1735 = vpack.c.b16 %v1727, %v1726
      %v1736 = vpack.c.b16 %v1729, %v1728
      %v1737 = vpack.c.b16 %v1731, %v1730
      %v1738 = vpack.c.b16 %v1733, %v1732
      %v1739 = vpack.c.b16 %v1734, %v1734
      %vm1744 = vcmask 588800
      %v1746 = vsel %vm1744, %v1685, 0
      %v1749 = vsel %vm1744, %v1686, 0
      %v1752 = vsel %vm1744, %v1687, 0
      %v1755 = vsel %vm1744, %v1688, 0
      %v1758 = vsel %vm1744, %v1689, 0
      %v1761 = vsel %vm1744, %v1690, 0
      %v1764 = vsel %vm1744, %v1691, 0
      %v1767 = vsel %vm1744, %v1692, 0
      %v1770 = vsel %vm1744, %v1693, 0
      %v1773 = vsel %vm1744, %v1694, 0
      %v1776 = vsel %vm1744, %v1695, 0
      %v1779 = vsel %vm1744, %v1696, 0
      %v1782 = vsel %vm1744, %v1697, 0
      %v1785 = vsel %vm1744, %v1698, 0
      %v1788 = vsel %vm1744, %v1699, 0
      %v1791 = vsel %vm1744, %v1700, 0
      %vm1793 = vcmask 1043456
      %v1795 = vsel %vm1793, %v1739, 0
      %1797 = vmatprep.subr.bf16.mxu0 0
      %1798 = vmatpush1.bf16.msra.mxu0 %v1735
      %1799 = vmatprep.subr.bf16.mxu0 0
      %1800 = vmatpush1.bf16.msra.mxu0 %v1736
      %1801 = vmatprep.subr.bf16.mxu0 0
      %1802 = vmatpush1.bf16.msra.mxu0 %v1737
      %1803 = vmatprep.subr.bf16.mxu0 0
      %1804 = vmatpush1.bf16.msra.mxu0 %v1738
      %1805 = vmatprep.subr.bf16.mxu0 0
      %1806 = vmatpush1.bf16.msra.mxu0 %v1795
      %1807 = vmatprep.subr.bf16.mxu0 0
      %1808 = vmatpush1.bf16.msra.mxu0 0
      %1809 = vmatprep.subr.bf16.mxu0 0
      %1810 = vmatpush1.bf16.msra.mxu0 0
      %1811 = vmatprep.subr.bf16.mxu0 0
      %1812 = vmatpush1.bf16.msra.mxu0 0
      %1813 = vmatprep.subr.bf16.mxu0 0
      %1814 = vmatpush1.bf16.msra.mxu0 0
      %1815 = vmatprep.subr.bf16.mxu0 0
      %1816 = vmatpush1.bf16.msra.mxu0 0
      %1817 = vmatprep.subr.bf16.mxu0 0
      %1818 = vmatpush1.bf16.msra.mxu0 0
      %1819 = vmatprep.subr.bf16.mxu0 0
      %1820 = vmatpush1.bf16.msra.mxu0 0
      %1821 = vmatprep.subr.bf16.mxu0 0
      %1822 = vmatpush1.bf16.msra.mxu0 0
      %1823 = vmatprep.subr.bf16.mxu0 0
      %1824 = vmatpush1.bf16.msra.mxu0 0
      %1825 = vmatprep.subr.bf16.mxu0 0
      %1826 = vmatpush1.bf16.msra.mxu0 0
      %1827 = vmatprep.subr.bf16.mxu0 0
      %1828 = vmatpush1.bf16.msra.mxu0 0
      %1829 = vmatprep.mubr.bf16.mxu0 0
      %1830 = vmatmul.mubr.bf16.gmra.mrb[0].mxu0 %v1746
      %v1831 = vpop.f32.mrb[0].mxu0
      %v1832 = vadd.f32 %v1715, %v1831
      %v1833 = vpop.f32.mrb[0].mxu0
      %v1834 = vpop.f32.mrb[0].mxu0
      %v1835 = vadd.f32 %v1715, %v1834
      %v1836 = vpop.f32.mrb[0].mxu0
      %1837 = vmatprep.mubr.bf16.mxu0 0
      %1838 = vmatmul.mubr.bf16.gmra.mrb[0].mxu0 %v1749
      %v1839 = vpop.f32.mrb[0].mxu0
      %v1840 = vadd.f32 %v1715, %v1839
      %v1841 = vpop.f32.mrb[0].mxu0
      %v1842 = vpop.f32.mrb[0].mxu0
      %v1843 = vadd.f32 %v1715, %v1842
      %v1844 = vpop.f32.mrb[0].mxu0
      %1845 = vmatprep.mubr.bf16.mxu0 0
      %1846 = vmatmul.mubr.bf16.gmra.mrb[0].mxu0 %v1752
      %v1847 = vpop.f32.mrb[0].mxu0
      %v1848 = vadd.f32 %v1715, %v1847
      %v1849 = vpop.f32.mrb[0].mxu0
      %v1850 = vpop.f32.mrb[0].mxu0
      %v1851 = vadd.f32 %v1715, %v1850
      %v1852 = vpop.f32.mrb[0].mxu0
      %1853 = vmatprep.mubr.bf16.mxu0 0
      %1854 = vmatmul.mubr.bf16.gmra.mrb[0].mxu0 %v1755
      %v1855 = vpop.f32.mrb[0].mxu0
      %v1856 = vadd.f32 %v1715, %v1855
      %v1857 = vpop.f32.mrb[0].mxu0
      %v1858 = vpop.f32.mrb[0].mxu0
      %v1859 = vadd.f32 %v1715, %v1858
      %v1860 = vpop.f32.mrb[0].mxu0
      %1861 = vmatprep.mubr.bf16.mxu0 0
      %1862 = vmatmul.mubr.bf16.gmra.mrb[0].mxu0 %v1758
      %v1863 = vpop.f32.mrb[0].mxu0
      %v1864 = vadd.f32 %v1715, %v1863
      %v1865 = vpop.f32.mrb[0].mxu0
      %v1866 = vpop.f32.mrb[0].mxu0
      %v1867 = vadd.f32 %v1715, %v1866
      %v1868 = vpop.f32.mrb[0].mxu0
      %1869 = vmatprep.mubr.bf16.mxu0 0
      %1870 = vmatmul.mubr.bf16.gmra.mrb[0].mxu0 %v1761
      %v1871 = vpop.f32.mrb[0].mxu0
      %v1872 = vadd.f32 %v1715, %v1871
      %v1873 = vpop.f32.mrb[0].mxu0
      %v1874 = vpop.f32.mrb[0].mxu0
      %v1875 = vadd.f32 %v1715, %v1874
      %v1876 = vpop.f32.mrb[0].mxu0
      %1877 = vmatprep.mubr.bf16.mxu0 0
      %1878 = vmatmul.mubr.bf16.gmra.mrb[0].mxu0 %v1764
      %v1879 = vpop.f32.mrb[0].mxu0
      %v1880 = vadd.f32 %v1715, %v1879
      %v1881 = vpop.f32.mrb[0].mxu0
      %v1882 = vpop.f32.mrb[0].mxu0
      %v1883 = vadd.f32 %v1715, %v1882
      %v1884 = vpop.f32.mrb[0].mxu0
      %1885 = vmatprep.mubr.bf16.mxu0 0
      %1886 = vmatmul.mubr.bf16.gmra.mrb[0].mxu0 %v1767
      %v1887 = vpop.f32.mrb[0].mxu0
      %v1888 = vadd.f32 %v1715, %v1887
      %v1889 = vpop.f32.mrb[0].mxu0
      %v1890 = vpop.f32.mrb[0].mxu0
      %v1891 = vadd.f32 %v1715, %v1890
      %v1892 = vpop.f32.mrb[0].mxu0
      %1893 = vmatprep.mubr.bf16.mxu0 0
      %1894 = vmatmul.mubr.bf16.gmra.mrb[0].mxu0 %v1770
      %v1895 = vpop.f32.mrb[0].mxu0
      %v1896 = vadd.f32 %v1715, %v1895
      %v1897 = vpop.f32.mrb[0].mxu0
      %v1898 = vpop.f32.mrb[0].mxu0
      %v1899 = vadd.f32 %v1715, %v1898
      %v1900 = vpop.f32.mrb[0].mxu0
      %1901 = vmatprep.mubr.bf16.mxu0 0
      %1902 = vmatmul.mubr.bf16.gmra.mrb[0].mxu0 %v1773
      %v1903 = vpop.f32.mrb[0].mxu0
      %v1904 = vadd.f32 %v1715, %v1903
      %v1905 = vpop.f32.mrb[0].mxu0
      %v1906 = vpop.f32.mrb[0].mxu0
      %v1907 = vadd.f32 %v1715, %v1906
      %v1908 = vpop.f32.mrb[0].mxu0
      %1909 = vmatprep.mubr.bf16.mxu0 0
      %1910 = vmatmul.mubr.bf16.gmra.mrb[0].mxu0 %v1776
      %v1911 = vpop.f32.mrb[0].mxu0
      %v1912 = vadd.f32 %v1715, %v1911
      %v1913 = vpop.f32.mrb[0].mxu0
      %v1914 = vpop.f32.mrb[0].mxu0
      %v1915 = vadd.f32 %v1715, %v1914
      %v1916 = vpop.f32.mrb[0].mxu0
      %1917 = vmatprep.mubr.bf16.mxu0 0
      %1918 = vmatmul.mubr.bf16.gmra.mrb[0].mxu0 %v1779
      %v1919 = vpop.f32.mrb[0].mxu0
      %v1920 = vadd.f32 %v1715, %v1919
      %v1921 = vpop.f32.mrb[0].mxu0
      %v1922 = vpop.f32.mrb[0].mxu0
      %v1923 = vadd.f32 %v1715, %v1922
      %v1924 = vpop.f32.mrb[0].mxu0
      %1925 = vmatprep.mubr.bf16.mxu0 0
      %1926 = vmatmul.mubr.bf16.gmra.mrb[0].mxu0 %v1782
      %v1927 = vpop.f32.mrb[0].mxu0
      %v1928 = vadd.f32 %v1715, %v1927
      %v1929 = vpop.f32.mrb[0].mxu0
      %v1930 = vpop.f32.mrb[0].mxu0
      %v1931 = vadd.f32 %v1715, %v1930
      %v1932 = vpop.f32.mrb[0].mxu0
      %1933 = vmatprep.mubr.bf16.mxu0 0
      %1934 = vmatmul.mubr.bf16.gmra.mrb[0].mxu0 %v1785
      %v1935 = vpop.f32.mrb[0].mxu0
      %v1936 = vadd.f32 %v1715, %v1935
      %v1937 = vpop.f32.mrb[0].mxu0
      %v1938 = vpop.f32.mrb[0].mxu0
      %v1939 = vadd.f32 %v1715, %v1938
      %v1940 = vpop.f32.mrb[0].mxu0
      %1941 = vmatprep.mubr.bf16.mxu0 0
      %1942 = vmatmul.mubr.bf16.gmra.mrb[0].mxu0 %v1788
      %v1943 = vpop.f32.mrb[0].mxu0
      %v1944 = vadd.f32 %v1715, %v1943
      %v1945 = vpop.f32.mrb[0].mxu0
      %v1946 = vpop.f32.mrb[0].mxu0
      %v1947 = vadd.f32 %v1715, %v1946
      %v1948 = vpop.f32.mrb[0].mxu0
      %1949 = vmatprep.mubr.bf16.mxu0 0
      %1950 = vmatmul.mubr.bf16.gmra.mrb[0].mxu0 %v1791
      %v1951 = vpop.f32.mrb[0].mxu0
      %v1952 = vadd.f32 %v1715, %v1951
      %v1953 = vpop.f32.mrb[0].mxu0
      %v1954 = vpop.f32.mrb[0].mxu0
      %v1955 = vadd.f32 %v1715, %v1954
      %v1956 = vpop.f32.mrb[0].mxu0
      %1957 = vdwg.mxu0
      %vm1958 = vcmask 31744
      %1959 = vst.msk [vmem:[%s170] sm:$0xff] %vm1958, %v1832
      %1960 = vst.msk [vmem:[%s170 + $0x8] sm:$0xff] %vm1958, %v1835
      %1961 = vst.msk [vmem:[%s170 + $0x10] sm:$0xff] %vm1958, %v1840
      %1962 = vst.msk [vmem:[%s170 + $0x18] sm:$0xff] %vm1958, %v1843
      %1963 = vst.msk [vmem:[%s170 + $0x20] sm:$0xff] %vm1958, %v1848
      %1964 = vst.msk [vmem:[%s170 + $0x28] sm:$0xff] %vm1958, %v1851
      %1965 = vst.msk [vmem:[%s170 + $0x30] sm:$0xff] %vm1958, %v1856
      %1966 = vst.msk [vmem:[%s170 + $0x38] sm:$0xff] %vm1958, %v1859
      %1967 = vst.msk [vmem:[%s170 + $0x40] sm:$0xff] %vm1958, %v1864
      %1968 = vst.msk [vmem:[%s170 + $0x48] sm:$0xff] %vm1958, %v1867
      %1969 = vst.msk [vmem:[%s170 + $0x50] sm:$0xff] %vm1958, %v1872
      %1970 = vst.msk [vmem:[%s170 + $0x58] sm:$0xff] %vm1958, %v1875
      %1971 = vst.msk [vmem:[%s170 + $0x60] sm:$0xff] %vm1958, %v1880
      %1972 = vst.msk [vmem:[%s170 + $0x68] sm:$0xff] %vm1958, %v1883
      %1973 = vst.msk [vmem:[%s170 + $0x70] sm:$0xff] %vm1958, %v1888
      %1974 = vst.msk [vmem:[%s170 + $0x78] sm:$0xff] %vm1958, %v1891
      %1975 = vst.msk [vmem:[%s170 + $0x80] sm:$0xff] %vm1958, %v1896
      %1976 = vst.msk [vmem:[%s170 + $0x88] sm:$0xff] %vm1958, %v1899
      %1977 = vst.msk [vmem:[%s170 + $0x90] sm:$0xff] %vm1958, %v1904
      %1978 = vst.msk [vmem:[%s170 + $0x98] sm:$0xff] %vm1958, %v1907
      %1979 = vst.msk [vmem:[%s170 + $0xa0] sm:$0xff] %vm1958, %v1912
      %1980 = vst.msk [vmem:[%s170 + $0xa8] sm:$0xff] %vm1958, %v1915
      %1981 = vst.msk [vmem:[%s170 + $0xb0] sm:$0xff] %vm1958, %v1920
      %1982 = vst.msk [vmem:[%s170 + $0xb8] sm:$0xff] %vm1958, %v1923
      %1983 = vst.msk [vmem:[%s170 + $0xc0] sm:$0xff] %vm1958, %v1928
      %1984 = vst.msk [vmem:[%s170 + $0xc8] sm:$0xff] %vm1958, %v1931
      %1985 = vst.msk [vmem:[%s170 + $0xd0] sm:$0xff] %vm1958, %v1936
      %1986 = vst.msk [vmem:[%s170 + $0xd8] sm:$0xff] %vm1958, %v1939
      %1987 = vst.msk [vmem:[%s170 + $0xe0] sm:$0xff] %vm1958, %v1944
      %1988 = vst.msk [vmem:[%s170 + $0xe8] sm:$0xff] %vm1958, %v1947
      %1989 = vst.msk [vmem:[%s170 + $0xf0] sm:$0xff] %vm1958, %v1952
      %1990 = vst.msk [vmem:[%s170 + $0xf8] sm:$0xff] %vm1958, %v1955
      %p1991 = scmp.lt.s32.totalorder %s14, 1
      %s1992 = scalar_select %p1991, %s14, 1
      %s1993 = smul.addr %s1992, 32
      %s1994 = smul.addr %s1993, 8
      %s1995 = scalar_lea.vmem %s3, %s1994
      // Predicated region
      $region33: #{_lambda_.1} parent=31 // pred_check
        %p1996 = pneg %p100
      $region34: #{_lambda_.1} parent=31 // pred_check_branch
        %1998 = sbr.rel (%p1996) target = $region36
      $region35: #{_lambda_.1} parent=31 // pred_region
        _
      $region36: #{_lambda_.1} parent=31 // pred_fallthru
        _
    $region32: #{_lambda_.1} parent=5 // pred_fallthru
      _
    %p1999 = scmp.le.s32.totalorder 2, %s9
    // Predicated region
    $region37: #{_lambda_.1} parent=5 // pred_check
      %p2000 = pneg %p1999
    $region38: #{_lambda_.1} parent=5 // pred_check_branch
      %2002 = sbr.rel (%p2000) target = $region40
    $region39: #{_lambda_.1} parent=5 // pred_region
      %s2003 = ssub.s32 %s9, 2
      // Predicated region
      $region41: #{_lambda_.1} parent=39 // pred_check
        %p2004 = pneg %p106
      $region42: #{_lambda_.1} parent=39 // pred_check_branch
        %2006 = sbr.rel (%p2004) target = $region44
      $region43: #{_lambda_.1} parent=39 // pred_region
        %p2007 = scmp.lt.s32.totalorder %s15, 1
        %s2008 = scalar_select %p2007, %s15, 1
        %s2009 = smul.addr %s2008, 32
        %s2010 = smul.addr %s2009, 8
        %s2011 = scalar_lea.vmem %s3, %s2010
      $region44: #{_lambda_.1} parent=39 // pred_fallthru
        _
    $region40: #{_lambda_.1} parent=5 // pred_fallthru
      _
  $region6: #{_lambda_.1} parent=0 // loop_footer
    %s13 = sadd.s32 1, %s9
  $region7: #{_lambda_.1} parent=0 // loop_footer_branch
    %8 = sbr.rel target = $region3
  $region8: #{_lambda_.1} parent=0 // loop_exit
    _

</llo_original>
